<compile_context>
chip_gen: v7x
topology: tpu7x:2x2x1
jax: 0.10.0
libtpu: 0.0.40
codegen_flags: <defaults>
</compile_context>

<pallas_src>
import numpy as np
import jax
import jax.numpy as jnp
from jax import lax
from jax.experimental import pallas as pl
from jax.experimental.pallas import tpu as pltpu

EPS = 1e-5  # PyTorch BatchNorm2d default


# ------------------------------ Pallas kernel --------------------------------

def _make_kernel(n, ho, wo, cout):
    nl = n * wo * cout                       # lane width of every activation slab
    inv_cnt = 1.0 / float(n * ho * wo)       # 1 / number of elements per channel (training BN)

    def kernel(x_ref, w1_ref, a23_ref, gb_ref, o_ref):
        # x_ref:   (Ho, N*2*W*Cin)  input rows packed in pairs per image, batch on lanes
        # w1_ref:  (2*N*2*W*Cin, NL) K-fused, block-diag-over-N banded weight for conv1 (stride 2)
        # a23_ref: (2, 3*NL, NL)     K-fused banded weights for the two stride-1 convs
        # gb_ref:  (3, 2, NL)        per-stage [gamma; beta], tiled on the lane axis
        # o_ref:   (Ho, NL)          lane-dense (128-wide) output slab -> unmasked stores
        f32 = jnp.float32
        x = x_ref[...]

        # Image top/bottom == slab top/bottom (batch is on lanes), so a plain static concat with a
        # zero row is exact H-padding: no boundary masks needed.
        def shift_down(v):                   # v[r] -> v[r-1]
            return jnp.concatenate([jnp.zeros((1, v.shape[1]), f32), v[:-1, :]], axis=0)

        def shift_up(v):                     # v[r] -> v[r+1]
            return jnp.concatenate([v[1:, :], jnp.zeros((1, v.shape[1]), f32)], axis=0)

        # Per-channel group-average matrix generated in-kernel (iota + compare; no DMA'd constant).
        li = lax.broadcasted_iota(jnp.int32, (nl, nl), 0) % cout
        lj = lax.broadcasted_iota(jnp.int32, (nl, nl), 1) % cout
        m = jnp.where(li == lj, jnp.float32(inv_cnt), jnp.float32(0.0))

        def bn_relu(y, i):
            # Training-mode BN over (N, H, W); two-pass (mean, then centered var) to avoid
            # E[x^2]-E[x]^2 cancellation. Per-channel reduce + lane re-broadcast is one
            # (1,NL)@(NL,NL) matmul with `m`, so everything stays lane-dense.
            s1 = jnp.sum(y, axis=0, keepdims=True)
            mean = jnp.dot(s1, m, preferred_element_type=f32)
            d = y - mean
            s2 = jnp.sum(d * d, axis=0, keepdims=True)
            var = jnp.dot(s2, m, preferred_element_type=f32)          # biased variance
            scale = gb_ref[i, 0:1, :] * lax.rsqrt(var + EPS)
            shift = gb_ref[i, 1:2, :] - mean * scale
            return jnp.maximum(y * scale + shift, 0.0)

        # conv1: 3x3 stride 2 -> ONE K-fused MXU matmul (bias dropped: cancels under training BN)
        y = jnp.dot(jnp.concatenate([shift_down(x), x], axis=1), w1_ref[...],
                    preferred_element_type=f32)
        h = bn_relu(y, 0)

        def conv_s1(v, w):                   # 3x3 stride 1 -> ONE K-fused MXU matmul
            lhs = jnp.concatenate([shift_down(v), v, shift_up(v)], axis=1)
            return jnp.dot(lhs, w, preferred_element_type=f32)

        h = bn_relu(conv_s1(h, a23_ref[0]), 1)
        h = bn_relu(conv_s1(h, a23_ref[1]), 2)
        o_ref[...] = h

    return kernel


# ------------------------------ one-time param packing -----------------------

def _banded_weights(wt, win, wout, stride):
    """OIHW (Cout,Cin,3,3) -> (3, Win*Cin, Wout*Cout) per-kh-tap banded matrices.

    Folds the kw taps, the W-direction zero padding and the W stride into the weight, so each
    kh tap of the conv becomes a single lane-dense matmul.
    """
    cout, cin = wt.shape[0], wt.shape[1]
    wi = np.arange(win).reshape(1, win, 1)
    wo_ = np.arange(wout).reshape(1, 1, wout)
    kw = np.arange(3).reshape(3, 1, 1)
    sel = (wi == stride * wo_ + kw - 1).astype(np.float32)           # (3, Win, Wout) constant
    banded = jnp.einsum('kwv,oihk->hwivo', sel, wt.astype(jnp.float32))
    return banded.reshape(3, win * cin, wout * cout)


def pack_params(p, n, h, w):
    """One-time preprocessing of module parameters into kernel-ready operands (off the hot path)."""
    cout, cin = p["w1"].shape[0], p["w1"].shape[1]
    ho, wo = h // 2, w // 2
    l = wo * cout
    eye_n = jnp.eye(n, dtype=jnp.float32)

    def blk(a):                                # block-diagonal over the batch (batch on lanes)
        return jnp.kron(eye_n, a)

    # conv1 (stride 2): y[r] = P[r-1] @ c1a + P[r] @ c1b, fused along K -> one matmul.
    wk1 = _banded_weights(p["w1"], w, wo, stride=2)                  # (3, W*Cin, L)
    c1a = jnp.concatenate([jnp.zeros((w * cin, l), jnp.float32), wk1[0]], axis=0)
    c1b = jnp.concatenate([wk1[1], wk1[2]], axis=0)
    w1 = jnp.concatenate([blk(c1a), blk(c1b)], axis=0)               # (2*N*2*W*Cin, NL)

    # conv2/conv3 (stride 1): kh taps stacked along K -> one matmul each.
    def s1w(wt):
        a = _banded_weights(wt, wo, wo, stride=1)                    # (3, L, L)
        return jnp.concatenate([blk(a[0]), blk(a[1]), blk(a[2])], axis=0)   # (3*NL, NL)

    a23 = jnp.stack([s1w(p["w2"]), s1w(p["w3"])])                    # (2, 3*NL, NL)

    def lane(v):                               # (Cout,) -> (NL,): lane idx l holds v[l % Cout]
        return jnp.tile(v.astype(jnp.float32), n * wo)

    gb = jnp.stack([jnp.stack([lane(p["g1"]), lane(p["beta1"])]),
                    jnp.stack([lane(p["g2"]), lane(p["beta2"])]),
                    jnp.stack([lane(p["g3"]), lane(p["beta3"])])])   # (3, 2, NL)

    # conv biases b1/b2/b3 intentionally dropped: exact under training-mode BatchNorm.
    return {"w1": w1, "a23": a23, "gb": gb}


# ------------------------------ jitted forward --------------------------------

def compression_stage(x_nchw, packed):
    """Forward pass matching the PyTorch module (training-mode BatchNorm)."""
    n, cin, h, w = x_nchw.shape
    ho, wo = h // 2, w // 2
    nl = packed["a23"].shape[-1]
    cout = nl // (n * wo)

    # NCHW -> (Ho, N*2*W*Cin): row r holds, per image, the packed pair of input rows (2r, 2r+1),
    # lane-dense with (W, Cin) innermost. One transpose, folded into the same jit as the kernel.
    xp = x_nchw.astype(jnp.float32).reshape(n, cin, ho, 2, w)
    xp = jnp.transpose(xp, (2, 0, 3, 4, 1)).reshape(ho, n * 2 * w * cin)

    vmem = pl.BlockSpec(memory_space=pltpu.MemorySpace.VMEM)
    out2d = pl.pallas_call(
        _make_kernel(n, ho, wo, cout),
        out_shape=jax.ShapeDtypeStruct((ho, nl), jnp.float32),
        in_specs=[vmem, vmem, vmem, vmem],
        out_specs=vmem,
    )(xp, packed["w1"], packed["a23"], packed["gb"])

    # (Ho, N*Wo*Cout) -> NCHW
    return jnp.transpose(out2d.reshape(ho, n, wo, cout), (1, 3, 0, 2))


# ------------------------------ reference --------------------------------------

def _ref_forward(x_nchw, p):
    def conv(x, wt, b, stride):  # x NHWC, wt OIHW; explicit padding=1 (matches PyTorch)
        w_hwio = jnp.transpose(wt, (2, 3, 1, 0))
        y = lax.conv_general_dilated(
            x, w_hwio, (stride, stride), ((1, 1), (1, 1)),
            dimension_numbers=("NHWC", "HWIO", "NHWC"),
            precision=lax.Precision.HIGHEST)
        return y + b.reshape(1, 1, 1, -1)

    def bnr(x, g, b):
        mu = jnp.mean(x, axis=(0, 1, 2))
        vr = jnp.var(x, axis=(0, 1, 2))
        return jnp.maximum((x - mu) * lax.rsqrt(vr + EPS) * g + b, 0.0)

    x = jnp.transpose(x_nchw, (0, 2, 3, 1)).astype(jnp.float32)
    h = bnr(conv(x, p["w1"], p["b1"], 2), p["g1"], p["beta1"])
    h = bnr(conv(h, p["w2"], p["b2"], 1), p["g2"], p["beta2"])
    h = bnr(conv(h, p["w3"], p["b3"], 1), p["g3"], p["beta3"])
    return jnp.transpose(h, (0, 3, 1, 2))


# --------------------------------- main -----------------------------------------

if __name__ == "__main__":
    key = jax.random.PRNGKey(0)
    N, CIN, COUT, H, W = 2, 4, 8, 16, 16

    ks = jax.random.split(key, 14)
    params = {
        "w1": 0.1 * jax.random.normal(ks[0], (COUT, CIN, 3, 3), jnp.float32),
        "b1": 0.1 * jax.random.normal(ks[1], (COUT,), jnp.float32),
        "g1": 1.0 + 0.1 * jax.random.normal(ks[2], (COUT,), jnp.float32),
        "beta1": 0.1 * jax.random.normal(ks[3], (COUT,), jnp.float32),
        "w2": 0.1 * jax.random.normal(ks[4], (COUT, COUT, 3, 3), jnp.float32),
        "b2": 0.1 * jax.random.normal(ks[5], (COUT,), jnp.float32),
        "g2": 1.0 + 0.1 * jax.random.normal(ks[6], (COUT,), jnp.float32),
        "beta2": 0.1 * jax.random.normal(ks[7], (COUT,), jnp.float32),
        "w3": 0.1 * jax.random.normal(ks[8], (COUT, COUT, 3, 3), jnp.float32),
        "b3": 0.1 * jax.random.normal(ks[9], (COUT,), jnp.float32),
        "g3": 1.0 + 0.1 * jax.random.normal(ks[10], (COUT,), jnp.float32),
        "beta3": 0.1 * jax.random.normal(ks[11], (COUT,), jnp.float32),
    }

    x = jax.random.normal(ks[12], (N, CIN, H, W), jnp.float32)

    # One-time parameter packing (hoisted off the per-call critical path).
    packed = jax.tree_util.tree_map(jax.block_until_ready, pack_params(params, N, H, W))

    fwd = jax.jit(compression_stage)
    out = jax.block_until_ready(fwd(x, packed))
    assert out.shape == (N, COUT, H // 2, W // 2), out.shape

    ref = _ref_forward(x, params)
    max_err = float(jnp.max(jnp.abs(out - ref)))
    assert jnp.allclose(out, ref, atol=3e-3, rtol=3e-3), max_err

    print("KERNEL_OK")
</pallas_src>

<mosaic_0001>
module attributes {stable_mosaic.version = 11 : i64} {
  func.func @kernel(%arg0: memref<8x256xf32, #tpu.memory_space<vmem>>, %arg1: memref<512x128xf32, #tpu.memory_space<vmem>>, %arg2: memref<2x384x128xf32, #tpu.memory_space<vmem>>, %arg3: memref<3x2x128xf32, #tpu.memory_space<vmem>>, %arg4: memref<8x128xf32, #tpu.memory_space<vmem>>) attributes {dimension_semantics = [], scalar_prefetch = 0 : i64, scratch_operands = 0 : i64, tpu.core_type = #tpu.core_type<tc>} {
    %c0 = arith.constant 0 : index
    %c0_0 = arith.constant 0 : index
    %0 = vector.load %arg0[%c0, %c0_0] : memref<8x256xf32, #tpu.memory_space<vmem>>, vector<8x256xf32>
    %1 = tpu.iota {dimensions = array<i32: 0>} : vector<128x128xi32>
    %c8_i32 = arith.constant 8 : i32
    %c0_i32 = arith.constant 0 : i32
    %2 = arith.cmpi eq, %c8_i32, %c0_i32 : i32
    %c1_i32 = arith.constant 1 : i32
    %3 = arith.select %2, %c1_i32, %c8_i32 : i32
    %4 = vector.broadcast %3 : i32 to vector<128x128xi32>
    %5 = arith.remsi %1, %4 : vector<128x128xi32>
    %c0_i32_1 = arith.constant 0 : i32
    %6 = vector.broadcast %c0_i32_1 : i32 to vector<128x128xi32>
    %7 = arith.cmpi ne, %5, %6 : vector<128x128xi32>
    %c0_i32_2 = arith.constant 0 : i32
    %8 = vector.broadcast %c0_i32_2 : i32 to vector<128x128xi32>
    %9 = arith.cmpi slt, %5, %8 : vector<128x128xi32>
    %c0_i32_3 = arith.constant 0 : i32
    %10 = arith.cmpi slt, %3, %c0_i32_3 : i32
    %11 = vector.broadcast %10 : i1 to vector<128x128xi1>
    %12 = vector.broadcast %11 : vector<128x128xi1> to vector<128x128xi1>
    %13 = arith.xori %9, %12 : vector<128x128xi1>
    %14 = arith.andi %13, %7 : vector<128x128xi1>
    %15 = vector.broadcast %3 : i32 to vector<128x128xi32>
    %16 = arith.addi %5, %15 : vector<128x128xi32>
    %17 = arith.select %14, %16, %5 : vector<128x128xi1>, vector<128x128xi32>
    %18 = tpu.iota {dimensions = array<i32: 1>} : vector<128x128xi32>
    %c8_i32_4 = arith.constant 8 : i32
    %c0_i32_5 = arith.constant 0 : i32
    %19 = arith.cmpi eq, %c8_i32_4, %c0_i32_5 : i32
    %c1_i32_6 = arith.constant 1 : i32
    %20 = arith.select %19, %c1_i32_6, %c8_i32_4 : i32
    %21 = vector.broadcast %20 : i32 to vector<128x128xi32>
    %22 = arith.remsi %18, %21 : vector<128x128xi32>
    %c0_i32_7 = arith.constant 0 : i32
    %23 = vector.broadcast %c0_i32_7 : i32 to vector<128x128xi32>
    %24 = arith.cmpi ne, %22, %23 : vector<128x128xi32>
    %c0_i32_8 = arith.constant 0 : i32
    %25 = vector.broadcast %c0_i32_8 : i32 to vector<128x128xi32>
    %26 = arith.cmpi slt, %22, %25 : vector<128x128xi32>
    %c0_i32_9 = arith.constant 0 : i32
    %27 = arith.cmpi slt, %20, %c0_i32_9 : i32
    %28 = vector.broadcast %27 : i1 to vector<128x128xi1>
    %29 = vector.broadcast %28 : vector<128x128xi1> to vector<128x128xi1>
    %30 = arith.xori %26, %29 : vector<128x128xi1>
    %31 = arith.andi %30, %24 : vector<128x128xi1>
    %32 = vector.broadcast %20 : i32 to vector<128x128xi32>
    %33 = arith.addi %22, %32 : vector<128x128xi32>
    %34 = arith.select %31, %33, %22 : vector<128x128xi1>, vector<128x128xi32>
    %35 = arith.cmpi eq, %17, %34 : vector<128x128xi32>
    %cst = arith.constant 7.812500e-03 : f32
    %cst_10 = arith.constant 0.000000e+00 : f32
    %36 = vector.broadcast %cst : f32 to vector<128x128xf32>
    %37 = vector.broadcast %cst_10 : f32 to vector<128x128xf32>
    %38 = arith.select %35, %36, %37 : vector<128x128xi1>, vector<128x128xf32>
    %cst_11 = arith.constant 0.000000e+00 : f32
    %39 = vector.broadcast %cst_11 : f32 to vector<1x256xf32>
    %40 = vector.extract_strided_slice %0 {offsets = [0, 0], sizes = [7, 256], strides = [1, 1]} : vector<8x256xf32> to vector<7x256xf32>
    %41 = tpu.concatenate %39, %40 in 0 : vector<1x256xf32>, vector<7x256xf32> -> vector<8x256xf32>
    %42 = tpu.concatenate %41, %0 in 1 : vector<8x256xf32>, vector<8x256xf32> -> vector<8x512xf32>
    %c0_12 = arith.constant 0 : index
    %c0_13 = arith.constant 0 : index
    %43 = vector.load %arg1[%c0_12, %c0_13] : memref<512x128xf32, #tpu.memory_space<vmem>>, vector<512x128xf32>
    %cst_14 = arith.constant dense<0.000000e+00> : vector<8x128xf32>
    %44 = tpu.matmul %42, %43, %cst_14 {dimension_numbers = #tpu.dot_dimension_numbers<[1], [0], [0], [1], [0, 0, 1, 1], [], []>} : vector<8x512xf32>, vector<512x128xf32>, vector<8x128xf32> -> vector<8x128xf32>
    %cst_15 = arith.constant dense<0.000000e+00> : vector<128xf32>
    %45 = vector.multi_reduction <add>, %44, %cst_15 [0] : vector<8x128xf32> to vector<128xf32>
    %46 = vector.shape_cast %45 : vector<128xf32> to vector<1x128xf32>
    %cst_16 = arith.constant dense<0.000000e+00> : vector<1x128xf32>
    %47 = tpu.matmul %46, %38, %cst_16 {dimension_numbers = #tpu.dot_dimension_numbers<[1], [0], [0], [1], [0, 0, 1, 1], [], []>} : vector<1x128xf32>, vector<128x128xf32>, vector<1x128xf32> -> vector<1x128xf32>
    %48 = vector.broadcast %47 : vector<1x128xf32> to vector<8x128xf32>
    %49 = arith.subf %44, %48 : vector<8x128xf32>
    %50 = arith.mulf %49, %49 : vector<8x128xf32>
    %cst_17 = arith.constant dense<0.000000e+00> : vector<128xf32>
    %51 = vector.multi_reduction <add>, %50, %cst_17 [0] : vector<8x128xf32> to vector<128xf32>
    %52 = vector.shape_cast %51 : vector<128xf32> to vector<1x128xf32>
    %cst_18 = arith.constant dense<0.000000e+00> : vector<1x128xf32>
    %53 = tpu.matmul %52, %38, %cst_18 {dimension_numbers = #tpu.dot_dimension_numbers<[1], [0], [0], [1], [0, 0, 1, 1], [], []>} : vector<1x128xf32>, vector<128x128xf32>, vector<1x128xf32> -> vector<1x128xf32>
    %c0_19 = arith.constant 0 : index
    %c0_20 = arith.constant 0 : index
    %c0_21 = arith.constant 0 : index
    %54 = vector.load %arg3[%c0_19, %c0_20, %c0_21] : memref<3x2x128xf32, #tpu.memory_space<vmem>>, vector<1x1x128xf32>
    %55 = vector.shape_cast %54 : vector<1x1x128xf32> to vector<1x128xf32>
    %cst_22 = arith.constant 9.99999974E-6 : f32
    %56 = vector.broadcast %cst_22 : f32 to vector<1x128xf32>
    %57 = arith.addf %53, %56 : vector<1x128xf32>
    %58 = math.rsqrt %57 : vector<1x128xf32>
    %59 = arith.mulf %55, %58 : vector<1x128xf32>
    %c0_23 = arith.constant 0 : index
    %c1 = arith.constant 1 : index
    %c0_24 = arith.constant 0 : index
    %60 = vector.load %arg3[%c0_23, %c1, %c0_24] : memref<3x2x128xf32, #tpu.memory_space<vmem>>, vector<1x1x128xf32>
    %61 = vector.shape_cast %60 : vector<1x1x128xf32> to vector<1x128xf32>
    %62 = arith.mulf %47, %59 : vector<1x128xf32>
    %63 = arith.subf %61, %62 : vector<1x128xf32>
    %64 = vector.broadcast %59 : vector<1x128xf32> to vector<8x128xf32>
    %65 = arith.mulf %44, %64 : vector<8x128xf32>
    %66 = vector.broadcast %63 : vector<1x128xf32> to vector<8x128xf32>
    %67 = arith.addf %65, %66 : vector<8x128xf32>
    %cst_25 = arith.constant 0.000000e+00 : f32
    %68 = vector.broadcast %cst_25 : f32 to vector<8x128xf32>
    %69 = arith.maximumf %67, %68 : vector<8x128xf32>
    %c0_26 = arith.constant 0 : index
    %c0_27 = arith.constant 0 : index
    %c0_28 = arith.constant 0 : index
    %70 = vector.load %arg2[%c0_26, %c0_27, %c0_28] : memref<2x384x128xf32, #tpu.memory_space<vmem>>, vector<1x384x128xf32>
    %71 = vector.shape_cast %70 : vector<1x384x128xf32> to vector<384x128xf32>
    %cst_29 = arith.constant 0.000000e+00 : f32
    %72 = vector.broadcast %cst_29 : f32 to vector<1x128xf32>
    %73 = vector.extract_strided_slice %69 {offsets = [0, 0], sizes = [7, 128], strides = [1, 1]} : vector<8x128xf32> to vector<7x128xf32>
    %74 = tpu.concatenate %72, %73 in 0 : vector<1x128xf32>, vector<7x128xf32> -> vector<8x128xf32>
    %75 = vector.extract_strided_slice %69 {offsets = [1, 0], sizes = [7, 128], strides = [1, 1]} : vector<8x128xf32> to vector<7x128xf32>
    %cst_30 = arith.constant 0.000000e+00 : f32
    %76 = vector.broadcast %cst_30 : f32 to vector<1x128xf32>
    %77 = tpu.concatenate %75, %76 in 0 : vector<7x128xf32>, vector<1x128xf32> -> vector<8x128xf32>
    %78 = tpu.concatenate %74, %69, %77 in 1 : vector<8x128xf32>, vector<8x128xf32>, vector<8x128xf32> -> vector<8x384xf32>
    %cst_31 = arith.constant dense<0.000000e+00> : vector<8x128xf32>
    %79 = tpu.matmul %78, %71, %cst_31 {dimension_numbers = #tpu.dot_dimension_numbers<[1], [0], [0], [1], [0, 0, 1, 1], [], []>} : vector<8x384xf32>, vector<384x128xf32>, vector<8x128xf32> -> vector<8x128xf32>
    %cst_32 = arith.constant dense<0.000000e+00> : vector<128xf32>
    %80 = vector.multi_reduction <add>, %79, %cst_32 [0] : vector<8x128xf32> to vector<128xf32>
    %81 = vector.shape_cast %80 : vector<128xf32> to vector<1x128xf32>
    %cst_33 = arith.constant dense<0.000000e+00> : vector<1x128xf32>
    %82 = tpu.matmul %81, %38, %cst_33 {dimension_numbers = #tpu.dot_dimension_numbers<[1], [0], [0], [1], [0, 0, 1, 1], [], []>} : vector<1x128xf32>, vector<128x128xf32>, vector<1x128xf32> -> vector<1x128xf32>
    %83 = vector.broadcast %82 : vector<1x128xf32> to vector<8x128xf32>
    %84 = arith.subf %79, %83 : vector<8x128xf32>
    %85 = arith.mulf %84, %84 : vector<8x128xf32>
    %cst_34 = arith.constant dense<0.000000e+00> : vector<128xf32>
    %86 = vector.multi_reduction <add>, %85, %cst_34 [0] : vector<8x128xf32> to vector<128xf32>
    %87 = vector.shape_cast %86 : vector<128xf32> to vector<1x128xf32>
    %cst_35 = arith.constant dense<0.000000e+00> : vector<1x128xf32>
    %88 = tpu.matmul %87, %38, %cst_35 {dimension_numbers = #tpu.dot_dimension_numbers<[1], [0], [0], [1], [0, 0, 1, 1], [], []>} : vector<1x128xf32>, vector<128x128xf32>, vector<1x128xf32> -> vector<1x128xf32>
    %c1_36 = arith.constant 1 : index
    %c0_37 = arith.constant 0 : index
    %c0_38 = arith.constant 0 : index
    %89 = vector.load %arg3[%c1_36, %c0_37, %c0_38] : memref<3x2x128xf32, #tpu.memory_space<vmem>>, vector<1x1x128xf32>
    %90 = vector.shape_cast %89 : vector<1x1x128xf32> to vector<1x128xf32>
    %cst_39 = arith.constant 9.99999974E-6 : f32
    %91 = vector.broadcast %cst_39 : f32 to vector<1x128xf32>
    %92 = arith.addf %88, %91 : vector<1x128xf32>
    %93 = math.rsqrt %92 : vector<1x128xf32>
    %94 = arith.mulf %90, %93 : vector<1x128xf32>
    %c1_40 = arith.constant 1 : index
    %c1_41 = arith.constant 1 : index
    %c0_42 = arith.constant 0 : index
    %95 = vector.load %arg3[%c1_40, %c1_41, %c0_42] : memref<3x2x128xf32, #tpu.memory_space<vmem>>, vector<1x1x128xf32>
    %96 = vector.shape_cast %95 : vector<1x1x128xf32> to vector<1x128xf32>
    %97 = arith.mulf %82, %94 : vector<1x128xf32>
    %98 = arith.subf %96, %97 : vector<1x128xf32>
    %99 = vector.broadcast %94 : vector<1x128xf32> to vector<8x128xf32>
    %100 = arith.mulf %79, %99 : vector<8x128xf32>
    %101 = vector.broadcast %98 : vector<1x128xf32> to vector<8x128xf32>
    %102 = arith.addf %100, %101 : vector<8x128xf32>
    %cst_43 = arith.constant 0.000000e+00 : f32
    %103 = vector.broadcast %cst_43 : f32 to vector<8x128xf32>
    %104 = arith.maximumf %102, %103 : vector<8x128xf32>
    %c1_44 = arith.constant 1 : index
    %c0_45 = arith.constant 0 : index
    %c0_46 = arith.constant 0 : index
    %105 = vector.load %arg2[%c1_44, %c0_45, %c0_46] : memref<2x384x128xf32, #tpu.memory_space<vmem>>, vector<1x384x128xf32>
    %106 = vector.shape_cast %105 : vector<1x384x128xf32> to vector<384x128xf32>
    %cst_47 = arith.constant 0.000000e+00 : f32
    %107 = vector.broadcast %cst_47 : f32 to vector<1x128xf32>
    %108 = vector.extract_strided_slice %104 {offsets = [0, 0], sizes = [7, 128], strides = [1, 1]} : vector<8x128xf32> to vector<7x128xf32>
    %109 = tpu.concatenate %107, %108 in 0 : vector<1x128xf32>, vector<7x128xf32> -> vector<8x128xf32>
    %110 = vector.extract_strided_slice %104 {offsets = [1, 0], sizes = [7, 128], strides = [1, 1]} : vector<8x128xf32> to vector<7x128xf32>
    %cst_48 = arith.constant 0.000000e+00 : f32
    %111 = vector.broadcast %cst_48 : f32 to vector<1x128xf32>
    %112 = tpu.concatenate %110, %111 in 0 : vector<7x128xf32>, vector<1x128xf32> -> vector<8x128xf32>
    %113 = tpu.concatenate %109, %104, %112 in 1 : vector<8x128xf32>, vector<8x128xf32>, vector<8x128xf32> -> vector<8x384xf32>
    %cst_49 = arith.constant dense<0.000000e+00> : vector<8x128xf32>
    %114 = tpu.matmul %113, %106, %cst_49 {dimension_numbers = #tpu.dot_dimension_numbers<[1], [0], [0], [1], [0, 0, 1, 1], [], []>} : vector<8x384xf32>, vector<384x128xf32>, vector<8x128xf32> -> vector<8x128xf32>
    %cst_50 = arith.constant dense<0.000000e+00> : vector<128xf32>
    %115 = vector.multi_reduction <add>, %114, %cst_50 [0] : vector<8x128xf32> to vector<128xf32>
    %116 = vector.shape_cast %115 : vector<128xf32> to vector<1x128xf32>
    %cst_51 = arith.constant dense<0.000000e+00> : vector<1x128xf32>
    %117 = tpu.matmul %116, %38, %cst_51 {dimension_numbers = #tpu.dot_dimension_numbers<[1], [0], [0], [1], [0, 0, 1, 1], [], []>} : vector<1x128xf32>, vector<128x128xf32>, vector<1x128xf32> -> vector<1x128xf32>
    %118 = vector.broadcast %117 : vector<1x128xf32> to vector<8x128xf32>
    %119 = arith.subf %114, %118 : vector<8x128xf32>
    %120 = arith.mulf %119, %119 : vector<8x128xf32>
    %cst_52 = arith.constant dense<0.000000e+00> : vector<128xf32>
    %121 = vector.multi_reduction <add>, %120, %cst_52 [0] : vector<8x128xf32> to vector<128xf32>
    %122 = vector.shape_cast %121 : vector<128xf32> to vector<1x128xf32>
    %cst_53 = arith.constant dense<0.000000e+00> : vector<1x128xf32>
    %123 = tpu.matmul %122, %38, %cst_53 {dimension_numbers = #tpu.dot_dimension_numbers<[1], [0], [0], [1], [0, 0, 1, 1], [], []>} : vector<1x128xf32>, vector<128x128xf32>, vector<1x128xf32> -> vector<1x128xf32>
    %c2 = arith.constant 2 : index
    %c0_54 = arith.constant 0 : index
    %c0_55 = arith.constant 0 : index
    %124 = vector.load %arg3[%c2, %c0_54, %c0_55] : memref<3x2x128xf32, #tpu.memory_space<vmem>>, vector<1x1x128xf32>
    %125 = vector.shape_cast %124 : vector<1x1x128xf32> to vector<1x128xf32>
    %cst_56 = arith.constant 9.99999974E-6 : f32
    %126 = vector.broadcast %cst_56 : f32 to vector<1x128xf32>
    %127 = arith.addf %123, %126 : vector<1x128xf32>
    %128 = math.rsqrt %127 : vector<1x128xf32>
    %129 = arith.mulf %125, %128 : vector<1x128xf32>
    %c2_57 = arith.constant 2 : index
    %c1_58 = arith.constant 1 : index
    %c0_59 = arith.constant 0 : index
    %130 = vector.load %arg3[%c2_57, %c1_58, %c0_59] : memref<3x2x128xf32, #tpu.memory_space<vmem>>, vector<1x1x128xf32>
    %131 = vector.shape_cast %130 : vector<1x1x128xf32> to vector<1x128xf32>
    %132 = arith.mulf %117, %129 : vector<1x128xf32>
    %133 = arith.subf %131, %132 : vector<1x128xf32>
    %134 = vector.broadcast %129 : vector<1x128xf32> to vector<8x128xf32>
    %135 = arith.mulf %114, %134 : vector<8x128xf32>
    %136 = vector.broadcast %133 : vector<1x128xf32> to vector<8x128xf32>
    %137 = arith.addf %135, %136 : vector<8x128xf32>
    %cst_60 = arith.constant 0.000000e+00 : f32
    %138 = vector.broadcast %cst_60 : f32 to vector<8x128xf32>
    %139 = arith.maximumf %137, %138 : vector<8x128xf32>
    %c0_61 = arith.constant 0 : index
    %c0_62 = arith.constant 0 : index
    %140 = vector.load %arg4[%c0_61, %c0_62] : memref<8x128xf32, #tpu.memory_space<vmem>>, vector<8x128xf32>
    tpu.vector_store %arg4[%c0_61, %c0_62], %139 {strides = array<i32>} : memref<8x128xf32, #tpu.memory_space<vmem>>, vector<8x128xf32>,
    return
  }
}

</mosaic_0001>

<llo_original>
// kernel: compression_stage.1
$region0: #{compression_stage.1}
  #allocation0 [shape = 'u32[]', space=smem, size = 0x4, offset = 0x4, fixed_abs, tag = 'smem constant byte address 0x4 - core index']
  #allocation1 [shape = 'u32[144,128]{1,0:T(1,128)}', space=vmem, size = 0x12000, scoped, tag = 'internal scratch']
  %s0 = inlined_call_operand.vmem [shape: f32[8,256], index: 0, kind: input, shape index: {}]
  %s1 = inlined_call_operand.vmem [shape: f32[512,128], index: 1, kind: input, shape index: {}]
  %s2 = inlined_call_operand.hbm [shape: f32[2,384,128], index: 2, kind: input, shape index: {}]
  %s3 = inlined_call_operand.vmem [shape: f32[3,2,128], index: 3, kind: input, shape index: {}]
  %s4 = inlined_call_operand.vmem [shape: f32[8,128], index: 4, kind: output, shape index: {}]
  %s5 = sld [smem:[#allocation0]]
  $region30: #{compression_stage.1} parent=0
    _
  %s7 = ssub.s32 1, %s5
  %s8 = scalar_select 0, %s7, %s5
  $region1: #{compression_stage.1} parent=0
    #allocation2 [shape = 'u8[393216]{0}', space=vmem, size = 0x60000, scoped, tag = 'input window, operand 2, single buffered']
    #allocation3 [shape = 's32[1]{0}', space=sflag, size = 0x4, scoped, tag = 'scoped memory for compression_stage.1']
    %9 = vsyncpa [#allocation3], 0
    // Predicated region
    $region2: #{compression_stage.1} parent=1 // pred_check
      _
    $region3: #{compression_stage.1} parent=1 // pred_check_branch
      %11 = sbr.rel (0) target = $region5
    $region4: #{compression_stage.1} parent=1 // pred_region
      _
    $region5: #{compression_stage.1} parent=1 // pred_fallthru
      _
    // Predicated region
    $region6: #{compression_stage.1} parent=1 // pred_check
      _
    $region7: #{compression_stage.1} parent=1 // pred_check_branch
      %13 = sbr.rel (0) target = $region9
    $region8: #{compression_stage.1} parent=1 // pred_region
      _
    $region9: #{compression_stage.1} parent=1 // pred_fallthru
      _
    // Predicated region
    $region10: #{compression_stage.1} parent=1 // pred_check
      _
    $region11: #{compression_stage.1} parent=1 // pred_check_branch
      %15 = sbr.rel (0) target = $region13
    $region12: #{compression_stage.1} parent=1 // pred_region
      %s17 = ssub.s32 12288, 12288
      %18 = vsyncadd [#allocation3], %s17
      %s19 = sshll.u32 [#allocation2], 4
      %s20 = int_to_ptr.vmem [resolvable:$true] %s19
      %25 = dma.hbm_to_vmem [thread:$0]  %s2, 12288, %s20, [#allocation3], 128, 128, 8
    $region13: #{compression_stage.1} parent=1 // pred_fallthru
      _
    // Predicated region
    $region14: #{compression_stage.1} parent=1 // pred_check
      _
    $region15: #{compression_stage.1} parent=1 // pred_check_branch
      %27 = sbr.rel (0) target = $region17
    $region16: #{compression_stage.1} parent=1 // pred_region
      _
    $region17: #{compression_stage.1} parent=1 // pred_fallthru
      _
    // Predicated region
    $region18: #{compression_stage.1} parent=1 // pred_check
      _
    $region19: #{compression_stage.1} parent=1 // pred_check_branch
      %29 = sbr.rel (0) target = $region21
    $region20: #{compression_stage.1} parent=1 // pred_region
      %30 = dma.done [#allocation3], 12288
    $region21: #{compression_stage.1} parent=1 // pred_fallthru
      _
    %v31 = vld [vmem:[%s0] sm:$0xff]
    %v32 = vld [vmem:[%s0 + $0x8] sm:$0xff]
    %v33 = vlaneseq
    %v34 = vshrl.u32 %v33, 7
    %v35 = vadd.s32 %v34, 8
    %v36 = vadd.s32 %v34, 16
    %v37 = vadd.s32 %v34, 24
    %v38 = vadd.s32 %v34, 32
    %v39 = vadd.s32 %v34, 40
    %v40 = vadd.s32 %v34, 48
    %v41 = vadd.s32 %v34, 56
    %v42 = vadd.s32 %v34, 64
    %v43 = vadd.s32 %v34, 72
    %v44 = vadd.s32 %v34, 80
    %v45 = vadd.s32 %v34, 88
    %v46 = vadd.s32 %v34, 96
    %v47 = vadd.s32 %v34, 104
    %v48 = vadd.s32 %v34, 112
    %v49 = vadd.s32 %v34, 120
    %vm50 = vcmp.lt.s32.totalorder %v34, 0
    %v51 = vsub.s32 0, %v34
    %v52 = vsel %vm50, %v51, %v34
    %v53 = vshrl.u32 %v52, 3
    %v54 = vand.u32 %v52, 7
    %v55 = vsub.s32 0, %v54
    %v56 = vsel %vm50, %v55, %v54
    %vm57 = vcmp.lt.s32.totalorder %v35, 0
    %v58 = vsub.s32 0, %v35
    %v59 = vsel %vm57, %v58, %v35
    %v60 = vshrl.u32 %v59, 3
    %v61 = vand.u32 %v59, 7
    %v62 = vsub.s32 0, %v61
    %v63 = vsel %vm57, %v62, %v61
    %vm64 = vcmp.lt.s32.totalorder %v36, 0
    %v65 = vsub.s32 0, %v36
    %v66 = vsel %vm64, %v65, %v36
    %v67 = vshrl.u32 %v66, 3
    %v68 = vand.u32 %v66, 7
    %v69 = vsub.s32 0, %v68
    %v70 = vsel %vm64, %v69, %v68
    %vm71 = vcmp.lt.s32.totalorder %v37, 0
    %v72 = vsub.s32 0, %v37
    %v73 = vsel %vm71, %v72, %v37
    %v74 = vshrl.u32 %v73, 3
    %v75 = vand.u32 %v73, 7
    %v76 = vsub.s32 0, %v75
    %v77 = vsel %vm71, %v76, %v75
    %vm78 = vcmp.lt.s32.totalorder %v38, 0
    %v79 = vsub.s32 0, %v38
    %v80 = vsel %vm78, %v79, %v38
    %v81 = vshrl.u32 %v80, 3
    %v82 = vand.u32 %v80, 7
    %v83 = vsub.s32 0, %v82
    %v84 = vsel %vm78, %v83, %v82
    %vm85 = vcmp.lt.s32.totalorder %v39, 0
    %v86 = vsub.s32 0, %v39
    %v87 = vsel %vm85, %v86, %v39
    %v88 = vshrl.u32 %v87, 3
    %v89 = vand.u32 %v87, 7
    %v90 = vsub.s32 0, %v89
    %v91 = vsel %vm85, %v90, %v89
    %vm92 = vcmp.lt.s32.totalorder %v40, 0
    %v93 = vsub.s32 0, %v40
    %v94 = vsel %vm92, %v93, %v40
    %v95 = vshrl.u32 %v94, 3
    %v96 = vand.u32 %v94, 7
    %v97 = vsub.s32 0, %v96
    %v98 = vsel %vm92, %v97, %v96
    %vm99 = vcmp.lt.s32.totalorder %v41, 0
    %v100 = vsub.s32 0, %v41
    %v101 = vsel %vm99, %v100, %v41
    %v102 = vshrl.u32 %v101, 3
    %v103 = vand.u32 %v101, 7
    %v104 = vsub.s32 0, %v103
    %v105 = vsel %vm99, %v104, %v103
    %vm106 = vcmp.lt.s32.totalorder %v42, 0
    %v107 = vsub.s32 0, %v42
    %v108 = vsel %vm106, %v107, %v42
    %v109 = vshrl.u32 %v108, 3
    %v110 = vand.u32 %v108, 7
    %v111 = vsub.s32 0, %v110
    %v112 = vsel %vm106, %v111, %v110
    %vm113 = vcmp.lt.s32.totalorder %v43, 0
    %v114 = vsub.s32 0, %v43
    %v115 = vsel %vm113, %v114, %v43
    %v116 = vshrl.u32 %v115, 3
    %v117 = vand.u32 %v115, 7
    %v118 = vsub.s32 0, %v117
    %v119 = vsel %vm113, %v118, %v117
    %vm120 = vcmp.lt.s32.totalorder %v44, 0
    %v121 = vsub.s32 0, %v44
    %v122 = vsel %vm120, %v121, %v44
    %v123 = vshrl.u32 %v122, 3
    %v124 = vand.u32 %v122, 7
    %v125 = vsub.s32 0, %v124
    %v126 = vsel %vm120, %v125, %v124
    %vm127 = vcmp.lt.s32.totalorder %v45, 0
    %v128 = vsub.s32 0, %v45
    %v129 = vsel %vm127, %v128, %v45
    %v130 = vshrl.u32 %v129, 3
    %v131 = vand.u32 %v129, 7
    %v132 = vsub.s32 0, %v131
    %v133 = vsel %vm127, %v132, %v131
    %vm134 = vcmp.lt.s32.totalorder %v46, 0
    %v135 = vsub.s32 0, %v46
    %v136 = vsel %vm134, %v135, %v46
    %v137 = vshrl.u32 %v136, 3
    %v138 = vand.u32 %v136, 7
    %v139 = vsub.s32 0, %v138
    %v140 = vsel %vm134, %v139, %v138
    %vm141 = vcmp.lt.s32.totalorder %v47, 0
    %v142 = vsub.s32 0, %v47
    %v143 = vsel %vm141, %v142, %v47
    %v144 = vshrl.u32 %v143, 3
    %v145 = vand.u32 %v143, 7
    %v146 = vsub.s32 0, %v145
    %v147 = vsel %vm141, %v146, %v145
    %vm148 = vcmp.lt.s32.totalorder %v48, 0
    %v149 = vsub.s32 0, %v48
    %v150 = vsel %vm148, %v149, %v48
    %v151 = vshrl.u32 %v150, 3
    %v152 = vand.u32 %v150, 7
    %v153 = vsub.s32 0, %v152
    %v154 = vsel %vm148, %v153, %v152
    %vm155 = vcmp.lt.s32.totalorder %v49, 0
    %v156 = vsub.s32 0, %v49
    %v157 = vsel %vm155, %v156, %v49
    %v158 = vshrl.u32 %v157, 3
    %v159 = vand.u32 %v157, 7
    %v160 = vsub.s32 0, %v159
    %v161 = vsel %vm155, %v160, %v159
    %vm162 = vcmp.ne.s32.totalorder %v56, 0
    %vm163 = vcmp.ne.s32.totalorder %v63, 0
    %vm164 = vcmp.ne.s32.totalorder %v70, 0
    %vm165 = vcmp.ne.s32.totalorder %v77, 0
    %vm166 = vcmp.ne.s32.totalorder %v84, 0
    %vm167 = vcmp.ne.s32.totalorder %v91, 0
    %vm168 = vcmp.ne.s32.totalorder %v98, 0
    %vm169 = vcmp.ne.s32.totalorder %v105, 0
    %vm170 = vcmp.ne.s32.totalorder %v112, 0
    %vm171 = vcmp.ne.s32.totalorder %v119, 0
    %vm172 = vcmp.ne.s32.totalorder %v126, 0
    %vm173 = vcmp.ne.s32.totalorder %v133, 0
    %vm174 = vcmp.ne.s32.totalorder %v140, 0
    %vm175 = vcmp.ne.s32.totalorder %v147, 0
    %vm176 = vcmp.ne.s32.totalorder %v154, 0
    %vm177 = vcmp.ne.s32.totalorder %v161, 0
    %vm178 = vcmp.lt.s32.totalorder %v56, 0
    %vm179 = vcmp.lt.s32.totalorder %v63, 0
    %vm180 = vcmp.lt.s32.totalorder %v70, 0
    %vm181 = vcmp.lt.s32.totalorder %v77, 0
    %vm182 = vcmp.lt.s32.totalorder %v84, 0
    %vm183 = vcmp.lt.s32.totalorder %v91, 0
    %vm184 = vcmp.lt.s32.totalorder %v98, 0
    %vm185 = vcmp.lt.s32.totalorder %v105, 0
    %vm186 = vcmp.lt.s32.totalorder %v112, 0
    %vm187 = vcmp.lt.s32.totalorder %v119, 0
    %vm188 = vcmp.lt.s32.totalorder %v126, 0
    %vm189 = vcmp.lt.s32.totalorder %v133, 0
    %vm190 = vcmp.lt.s32.totalorder %v140, 0
    %vm191 = vcmp.lt.s32.totalorder %v147, 0
    %vm192 = vcmp.lt.s32.totalorder %v154, 0
    %vm193 = vcmp.lt.s32.totalorder %v161, 0
    %vm194 = vmand %vm178, %vm162
    %vm195 = vmand %vm179, %vm163
    %vm196 = vmand %vm180, %vm164
    %vm197 = vmand %vm181, %vm165
    %vm198 = vmand %vm182, %vm166
    %vm199 = vmand %vm183, %vm167
    %vm200 = vmand %vm184, %vm168
    %vm201 = vmand %vm185, %vm169
    %vm202 = vmand %vm186, %vm170
    %vm203 = vmand %vm187, %vm171
    %vm204 = vmand %vm188, %vm172
    %vm205 = vmand %vm189, %vm173
    %vm206 = vmand %vm190, %vm174
    %vm207 = vmand %vm191, %vm175
    %vm208 = vmand %vm192, %vm176
    %vm209 = vmand %vm193, %vm177
    %v210 = vadd.s32 %v56, 8
    %v211 = vadd.s32 %v63, 8
    %v212 = vadd.s32 %v70, 8
    %v213 = vadd.s32 %v77, 8
    %v214 = vadd.s32 %v84, 8
    %v215 = vadd.s32 %v91, 8
    %v216 = vadd.s32 %v98, 8
    %v217 = vadd.s32 %v105, 8
    %v218 = vadd.s32 %v112, 8
    %v219 = vadd.s32 %v119, 8
    %v220 = vadd.s32 %v126, 8
    %v221 = vadd.s32 %v133, 8
    %v222 = vadd.s32 %v140, 8
    %v223 = vadd.s32 %v147, 8
    %v224 = vadd.s32 %v154, 8
    %v225 = vadd.s32 %v161, 8
    %v226 = vsel %vm194, %v210, %v56
    %v227 = vsel %vm195, %v211, %v63
    %v228 = vsel %vm196, %v212, %v70
    %v229 = vsel %vm197, %v213, %v77
    %v230 = vsel %vm198, %v214, %v84
    %v231 = vsel %vm199, %v215, %v91
    %v232 = vsel %vm200, %v216, %v98
    %v233 = vsel %vm201, %v217, %v105
    %v234 = vsel %vm202, %v218, %v112
    %v235 = vsel %vm203, %v219, %v119
    %v236 = vsel %vm204, %v220, %v126
    %v237 = vsel %vm205, %v221, %v133
    %v238 = vsel %vm206, %v222, %v140
    %v239 = vsel %vm207, %v223, %v147
    %v240 = vsel %vm208, %v224, %v154
    %v241 = vsel %vm209, %v225, %v161
    %v242 = vlaneseq
    %v243 = vand.u32 %v242, 127
    %vm244 = vcmp.lt.s32.totalorder %v243, 0
    %v245 = vsub.s32 0, %v243
    %v246 = vsel %vm244, %v245, %v243
    %v247 = vshrl.u32 %v246, 3
    %v248 = vand.u32 %v246, 7
    %v249 = vsub.s32 0, %v248
    %v250 = vsel %vm244, %v249, %v248
    %vm251 = vcmp.ne.s32.totalorder %v250, 0
    %vm252 = vcmp.lt.s32.totalorder %v250, 0
    %vm253 = vmand %vm252, %vm251
    %v254 = vadd.s32 %v250, 8
    %v255 = vsel %vm253, %v254, %v250
    %vm256 = vcmp.eq.s32.totalorder %v226, %v255
    %vm257 = vcmp.eq.s32.totalorder %v227, %v255
    %vm258 = vcmp.eq.s32.totalorder %v228, %v255
    %vm259 = vcmp.eq.s32.totalorder %v229, %v255
    %vm260 = vcmp.eq.s32.totalorder %v230, %v255
    %vm261 = vcmp.eq.s32.totalorder %v231, %v255
    %vm262 = vcmp.eq.s32.totalorder %v232, %v255
    %vm263 = vcmp.eq.s32.totalorder %v233, %v255
    %vm264 = vcmp.eq.s32.totalorder %v234, %v255
    %vm265 = vcmp.eq.s32.totalorder %v235, %v255
    %vm266 = vcmp.eq.s32.totalorder %v236, %v255
    %vm267 = vcmp.eq.s32.totalorder %v237, %v255
    %vm268 = vcmp.eq.s32.totalorder %v238, %v255
    %vm269 = vcmp.eq.s32.totalorder %v239, %v255
    %vm270 = vcmp.eq.s32.totalorder %v240, %v255
    %vm271 = vcmp.eq.s32.totalorder %v241, %v255
    %v272 = vsel %vm256, 0.0078125, 0.0
    %v273 = vsel %vm257, 0.0078125, 0.0
    %v274 = vsel %vm258, 0.0078125, 0.0
    %v275 = vsel %vm259, 0.0078125, 0.0
    %v276 = vsel %vm260, 0.0078125, 0.0
    %v277 = vsel %vm261, 0.0078125, 0.0
    %v278 = vsel %vm262, 0.0078125, 0.0
    %v279 = vsel %vm263, 0.0078125, 0.0
    %v280 = vsel %vm264, 0.0078125, 0.0
    %v281 = vsel %vm265, 0.0078125, 0.0
    %v282 = vsel %vm266, 0.0078125, 0.0
    %v283 = vsel %vm267, 0.0078125, 0.0
    %v284 = vsel %vm268, 0.0078125, 0.0
    %v285 = vsel %vm269, 0.0078125, 0.0
    %v286 = vsel %vm270, 0.0078125, 0.0
    %v287 = vsel %vm271, 0.0078125, 0.0
    %v290 = vrot.slane %v31, 7
    %v291 = vrot.slane %v32, 7
    %vm294 = vcmask 1040384
    %v295 = vsel %vm294, 0.0, %v290
    %v296 = vsel %vm294, 0.0, %v291
    %v297 = vld [vmem:[%s1] sm:$0xff]
    %v298 = vld [vmem:[%s1 + $0x8] sm:$0xff]
    %v299 = vld [vmem:[%s1 + $0x10] sm:$0xff]
    %v300 = vld [vmem:[%s1 + $0x18] sm:$0xff]
    %v301 = vld [vmem:[%s1 + $0x20] sm:$0xff]
    %v302 = vld [vmem:[%s1 + $0x28] sm:$0xff]
    %v303 = vld [vmem:[%s1 + $0x30] sm:$0xff]
    %v304 = vld [vmem:[%s1 + $0x38] sm:$0xff]
    %v305 = vld [vmem:[%s1 + $0x40] sm:$0xff]
    %v306 = vld [vmem:[%s1 + $0x48] sm:$0xff]
    %v307 = vld [vmem:[%s1 + $0x50] sm:$0xff]
    %v308 = vld [vmem:[%s1 + $0x58] sm:$0xff]
    %v309 = vld [vmem:[%s1 + $0x60] sm:$0xff]
    %v310 = vld [vmem:[%s1 + $0x68] sm:$0xff]
    %v311 = vld [vmem:[%s1 + $0x70] sm:$0xff]
    %v312 = vld [vmem:[%s1 + $0x78] sm:$0xff]
    %v313 = vld [vmem:[%s1 + $0x80] sm:$0xff]
    %v314 = vld [vmem:[%s1 + $0x88] sm:$0xff]
    %v315 = vld [vmem:[%s1 + $0x90] sm:$0xff]
    %v316 = vld [vmem:[%s1 + $0x98] sm:$0xff]
    %v317 = vld [vmem:[%s1 + $0xa0] sm:$0xff]
    %v318 = vld [vmem:[%s1 + $0xa8] sm:$0xff]
    %v319 = vld [vmem:[%s1 + $0xb0] sm:$0xff]
    %v320 = vld [vmem:[%s1 + $0xb8] sm:$0xff]
    %v321 = vld [vmem:[%s1 + $0xc0] sm:$0xff]
    %v322 = vld [vmem:[%s1 + $0xc8] sm:$0xff]
    %v323 = vld [vmem:[%s1 + $0xd0] sm:$0xff]
    %v324 = vld [vmem:[%s1 + $0xd8] sm:$0xff]
    %v325 = vld [vmem:[%s1 + $0xe0] sm:$0xff]
    %v326 = vld [vmem:[%s1 + $0xe8] sm:$0xff]
    %v327 = vld [vmem:[%s1 + $0xf0] sm:$0xff]
    %v328 = vld [vmem:[%s1 + $0xf8] sm:$0xff]
    %v329 = vld [vmem:[%s1 + $0x100] sm:$0xff]
    %v330 = vld [vmem:[%s1 + $0x108] sm:$0xff]
    %v331 = vld [vmem:[%s1 + $0x110] sm:$0xff]
    %v332 = vld [vmem:[%s1 + $0x118] sm:$0xff]
    %v333 = vld [vmem:[%s1 + $0x120] sm:$0xff]
    %v334 = vld [vmem:[%s1 + $0x128] sm:$0xff]
    %v335 = vld [vmem:[%s1 + $0x130] sm:$0xff]
    %v336 = vld [vmem:[%s1 + $0x138] sm:$0xff]
    %v337 = vld [vmem:[%s1 + $0x140] sm:$0xff]
    %v338 = vld [vmem:[%s1 + $0x148] sm:$0xff]
    %v339 = vld [vmem:[%s1 + $0x150] sm:$0xff]
    %v340 = vld [vmem:[%s1 + $0x158] sm:$0xff]
    %v341 = vld [vmem:[%s1 + $0x160] sm:$0xff]
    %v342 = vld [vmem:[%s1 + $0x168] sm:$0xff]
    %v343 = vld [vmem:[%s1 + $0x170] sm:$0xff]
    %v344 = vld [vmem:[%s1 + $0x178] sm:$0xff]
    %v345 = vld [vmem:[%s1 + $0x180] sm:$0xff]
    %v346 = vld [vmem:[%s1 + $0x188] sm:$0xff]
    %v347 = vld [vmem:[%s1 + $0x190] sm:$0xff]
    %v348 = vld [vmem:[%s1 + $0x198] sm:$0xff]
    %v349 = vld [vmem:[%s1 + $0x1a0] sm:$0xff]
    %v350 = vld [vmem:[%s1 + $0x1a8] sm:$0xff]
    %v351 = vld [vmem:[%s1 + $0x1b0] sm:$0xff]
    %v352 = vld [vmem:[%s1 + $0x1b8] sm:$0xff]
    %v353 = vld [vmem:[%s1 + $0x1c0] sm:$0xff]
    %v354 = vld [vmem:[%s1 + $0x1c8] sm:$0xff]
    %v355 = vld [vmem:[%s1 + $0x1d0] sm:$0xff]
    %v356 = vld [vmem:[%s1 + $0x1d8] sm:$0xff]
    %v357 = vld [vmem:[%s1 + $0x1e0] sm:$0xff]
    %v358 = vld [vmem:[%s1 + $0x1e8] sm:$0xff]
    %v359 = vld [vmem:[%s1 + $0x1f0] sm:$0xff]
    %v360 = vld [vmem:[%s1 + $0x1f8] sm:$0xff]
    %361 = vmatprep.subr.mxu0 0.0
    %362 = vmatpush1.msra.mxu0 %v297
    %363 = vmatprep.subr.mxu0 0.0
    %364 = vmatpush1.msra.mxu0 %v298
    %365 = vmatprep.subr.mxu0 0.0
    %366 = vmatpush1.msra.mxu0 %v299
    %367 = vmatprep.subr.mxu0 0.0
    %368 = vmatpush1.msra.mxu0 %v300
    %369 = vmatprep.subr.mxu0 0.0
    %370 = vmatpush1.msra.mxu0 %v301
    %371 = vmatprep.subr.mxu0 0.0
    %372 = vmatpush1.msra.mxu0 %v302
    %373 = vmatprep.subr.mxu0 0.0
    %374 = vmatpush1.msra.mxu0 %v303
    %375 = vmatprep.subr.mxu0 0.0
    %376 = vmatpush1.msra.mxu0 %v304
    %377 = vmatprep.subr.mxu0 0.0
    %378 = vmatpush1.msra.mxu0 %v305
    %379 = vmatprep.subr.mxu0 0.0
    %380 = vmatpush1.msra.mxu0 %v306
    %381 = vmatprep.subr.mxu0 0.0
    %382 = vmatpush1.msra.mxu0 %v307
    %383 = vmatprep.subr.mxu0 0.0
    %384 = vmatpush1.msra.mxu0 %v308
    %385 = vmatprep.subr.mxu0 0.0
    %386 = vmatpush1.msra.mxu0 %v309
    %387 = vmatprep.subr.mxu0 0.0
    %388 = vmatpush1.msra.mxu0 %v310
    %389 = vmatprep.subr.mxu0 0.0
    %390 = vmatpush1.msra.mxu0 %v311
    %391 = vmatprep.subr.mxu0 0.0
    %392 = vmatpush1.msra.mxu0 %v312
    %393 = vmatprep.subr.mxu0 0.0
    %394 = vmatpush1.msra.mxu0 %v313
    %395 = vmatprep.subr.mxu0 0.0
    %396 = vmatpush1.msra.mxu0 %v314
    %397 = vmatprep.subr.mxu0 0.0
    %398 = vmatpush1.msra.mxu0 %v315
    %399 = vmatprep.subr.mxu0 0.0
    %400 = vmatpush1.msra.mxu0 %v316
    %401 = vmatprep.subr.mxu0 0.0
    %402 = vmatpush1.msra.mxu0 %v317
    %403 = vmatprep.subr.mxu0 0.0
    %404 = vmatpush1.msra.mxu0 %v318
    %405 = vmatprep.subr.mxu0 0.0
    %406 = vmatpush1.msra.mxu0 %v319
    %407 = vmatprep.subr.mxu0 0.0
    %408 = vmatpush1.msra.mxu0 %v320
    %409 = vmatprep.subr.mxu0 0.0
    %410 = vmatpush1.msra.mxu0 %v321
    %411 = vmatprep.subr.mxu0 0.0
    %412 = vmatpush1.msra.mxu0 %v322
    %413 = vmatprep.subr.mxu0 0.0
    %414 = vmatpush1.msra.mxu0 %v323
    %415 = vmatprep.subr.mxu0 0.0
    %416 = vmatpush1.msra.mxu0 %v324
    %417 = vmatprep.subr.mxu0 0.0
    %418 = vmatpush1.msra.mxu0 %v325
    %419 = vmatprep.subr.mxu0 0.0
    %420 = vmatpush1.msra.mxu0 %v326
    %421 = vmatprep.subr.mxu0 0.0
    %422 = vmatpush1.msra.mxu0 %v327
    %423 = vmatprep.subr.mxu0 0.0
    %424 = vmatpush1.msra.mxu0 %v328
    %425 = vmatprep.mubr.f32.mxu0 %v296
    %426 = vmatmul.mubr.f32.gmra.mrb[0].mxu0 %v295
    %v427 = vpop.f32.mrb[0].mxu0
    %v428 = vadd.f32 0.0, %v427
    %v429 = vpop.f32.mrb[0].mxu0
    %430 = vdwg.mxu0
    %431 = vmatprep.subr.mxu0 0.0
    %432 = vmatpush1.msra.mxu0 %v329
    %433 = vmatprep.subr.mxu0 0.0
    %434 = vmatpush1.msra.mxu0 %v330
    %435 = vmatprep.subr.mxu0 0.0
    %436 = vmatpush1.msra.mxu0 %v331
    %437 = vmatprep.subr.mxu0 0.0
    %438 = vmatpush1.msra.mxu0 %v332
    %439 = vmatprep.subr.mxu0 0.0
    %440 = vmatpush1.msra.mxu0 %v333
    %441 = vmatprep.subr.mxu0 0.0
    %442 = vmatpush1.msra.mxu0 %v334
    %443 = vmatprep.subr.mxu0 0.0
    %444 = vmatpush1.msra.mxu0 %v335
    %445 = vmatprep.subr.mxu0 0.0
    %446 = vmatpush1.msra.mxu0 %v336
    %447 = vmatprep.subr.mxu0 0.0
    %448 = vmatpush1.msra.mxu0 %v337
    %449 = vmatprep.subr.mxu0 0.0
    %450 = vmatpush1.msra.mxu0 %v338
    %451 = vmatprep.subr.mxu0 0.0
    %452 = vmatpush1.msra.mxu0 %v339
    %453 = vmatprep.subr.mxu0 0.0
    %454 = vmatpush1.msra.mxu0 %v340
    %455 = vmatprep.subr.mxu0 0.0
    %456 = vmatpush1.msra.mxu0 %v341
    %457 = vmatprep.subr.mxu0 0.0
    %458 = vmatpush1.msra.mxu0 %v342
    %459 = vmatprep.subr.mxu0 0.0
    %460 = vmatpush1.msra.mxu0 %v343
    %461 = vmatprep.subr.mxu0 0.0
    %462 = vmatpush1.msra.mxu0 %v344
    %463 = vmatprep.subr.mxu0 0.0
    %464 = vmatpush1.msra.mxu0 %v345
    %465 = vmatprep.subr.mxu0 0.0
    %466 = vmatpush1.msra.mxu0 %v346
    %467 = vmatprep.subr.mxu0 0.0
    %468 = vmatpush1.msra.mxu0 %v347
    %469 = vmatprep.subr.mxu0 0.0
    %470 = vmatpush1.msra.mxu0 %v348
    %471 = vmatprep.subr.mxu0 0.0
    %472 = vmatpush1.msra.mxu0 %v349
    %473 = vmatprep.subr.mxu0 0.0
    %474 = vmatpush1.msra.mxu0 %v350
    %475 = vmatprep.subr.mxu0 0.0
    %476 = vmatpush1.msra.mxu0 %v351
    %477 = vmatprep.subr.mxu0 0.0
    %478 = vmatpush1.msra.mxu0 %v352
    %479 = vmatprep.subr.mxu0 0.0
    %480 = vmatpush1.msra.mxu0 %v353
    %481 = vmatprep.subr.mxu0 0.0
    %482 = vmatpush1.msra.mxu0 %v354
    %483 = vmatprep.subr.mxu0 0.0
    %484 = vmatpush1.msra.mxu0 %v355
    %485 = vmatprep.subr.mxu0 0.0
    %486 = vmatpush1.msra.mxu0 %v356
    %487 = vmatprep.subr.mxu0 0.0
    %488 = vmatpush1.msra.mxu0 %v357
    %489 = vmatprep.subr.mxu0 0.0
    %490 = vmatpush1.msra.mxu0 %v358
    %491 = vmatprep.subr.mxu0 0.0
    %492 = vmatpush1.msra.mxu0 %v359
    %493 = vmatprep.subr.mxu0 0.0
    %494 = vmatpush1.msra.mxu0 %v360
    %495 = vmatprep.mubr.f32.mxu0 %v32
    %496 = vmatmul.mubr.f32.gmra.mrb[0].mxu0 %v31
    %v497 = vpop.f32.mrb[0].mxu0
    %v498 = vadd.f32 %v428, %v497
    %v499 = vpop.f32.mrb[0].mxu0
    %500 = vdwg.mxu0
    %v501 = vrot.slane %v498, 4
    %v502 = vadd.f32 %v498, %v501
    %v503 = vrot.slane %v502, 2
    %v504 = vadd.f32 %v502, %v503
    %v505 = vrot.slane %v504, 1
    %v506 = vadd.f32 %v504, %v505
    %507 = vmatprep.subr.mxu0 0.0
    %508 = vmatpush1.msra.mxu0 %v272
    %509 = vmatprep.subr.mxu0 0.0
    %510 = vmatpush1.msra.mxu0 %v273
    %511 = vmatprep.subr.mxu0 0.0
    %512 = vmatpush1.msra.mxu0 %v274
    %513 = vmatprep.subr.mxu0 0.0
    %514 = vmatpush1.msra.mxu0 %v275
    %515 = vmatprep.subr.mxu0 0.0
    %516 = vmatpush1.msra.mxu0 %v276
    %517 = vmatprep.subr.mxu0 0.0
    %518 = vmatpush1.msra.mxu0 %v277
    %519 = vmatprep.subr.mxu0 0.0
    %520 = vmatpush1.msra.mxu0 %v278
    %521 = vmatprep.subr.mxu0 0.0
    %522 = vmatpush1.msra.mxu0 %v279
    %523 = vmatprep.subr.mxu0 0.0
    %524 = vmatpush1.msra.mxu0 %v280
    %525 = vmatprep.subr.mxu0 0.0
    %526 = vmatpush1.msra.mxu0 %v281
    %527 = vmatprep.subr.mxu0 0.0
    %528 = vmatpush1.msra.mxu0 %v282
    %529 = vmatprep.subr.mxu0 0.0
    %530 = vmatpush1.msra.mxu0 %v283
    %531 = vmatprep.subr.mxu0 0.0
    %532 = vmatpush1.msra.mxu0 %v284
    %533 = vmatprep.subr.mxu0 0.0
    %534 = vmatpush1.msra.mxu0 %v285
    %535 = vmatprep.subr.mxu0 0.0
    %536 = vmatpush1.msra.mxu0 %v286
    %537 = vmatprep.subr.mxu0 0.0
    %538 = vmatpush1.msra.mxu0 %v287
    %539 = vmatprep.subr.mxu0 0.0
    %540 = vmatpush1.msra.mxu0 0.0
    %541 = vmatprep.subr.mxu0 0.0
    %542 = vmatpush1.msra.mxu0 0.0
    %543 = vmatprep.subr.mxu0 0.0
    %544 = vmatpush1.msra.mxu0 0.0
    %545 = vmatprep.subr.mxu0 0.0
    %546 = vmatpush1.msra.mxu0 0.0
    %547 = vmatprep.subr.mxu0 0.0
    %548 = vmatpush1.msra.mxu0 0.0
    %549 = vmatprep.subr.mxu0 0.0
    %550 = vmatpush1.msra.mxu0 0.0
    %551 = vmatprep.subr.mxu0 0.0
    %552 = vmatpush1.msra.mxu0 0.0
    %553 = vmatprep.subr.mxu0 0.0
    %554 = vmatpush1.msra.mxu0 0.0
    %555 = vmatprep.subr.mxu0 0.0
    %556 = vmatpush1.msra.mxu0 0.0
    %557 = vmatprep.subr.mxu0 0.0
    %558 = vmatpush1.msra.mxu0 0.0
    %559 = vmatprep.subr.mxu0 0.0
    %560 = vmatpush1.msra.mxu0 0.0
    %561 = vmatprep.subr.mxu0 0.0
    %562 = vmatpush1.msra.mxu0 0.0
    %563 = vmatprep.subr.mxu0 0.0
    %564 = vmatpush1.msra.mxu0 0.0
    %565 = vmatprep.subr.mxu0 0.0
    %566 = vmatpush1.msra.mxu0 0.0
    %567 = vmatprep.subr.mxu0 0.0
    %568 = vmatpush1.msra.mxu0 0.0
    %569 = vmatprep.subr.mxu0 0.0
    %570 = vmatpush1.msra.mxu0 0.0
    %571 = vmatprep.mubr.f32.mxu0 0.0
    %572 = vmatmul.mubr.f32.gmra.mrb[0].mxu0 %v506
    %v573 = vpop.f32.mrb[0].mxu0
    %v574 = vadd.f32 0.0, %v573
    %v575 = vpop.f32.mrb[0].mxu0
    %576 = vdwg.mxu0
    %v577 = vlaneseq
    %v578 = vshrl.u32 %v577, 7
    %v579 = vsub.s32 0, %v578
    %v580 = vrot.slane %v574, %v579
    %v581 = vsub.f32 %v498, %v580
    %v582 = vmul.f32 %v581, %v581
    %v583 = vrot.slane %v582, 4
    %v584 = vadd.f32 %v582, %v583
    %v585 = vrot.slane %v584, 2
    %v586 = vadd.f32 %v584, %v585
    %v587 = vrot.slane %v586, 1
    %v588 = vadd.f32 %v586, %v587
    %v589 = vld [vmem:[%s3] sm:$0x1]
    %590 = vmatprep.subr.mxu0 0.0
    %591 = vmatpush1.msra.mxu0 %v272
    %592 = vmatprep.subr.mxu0 0.0
    %593 = vmatpush1.msra.mxu0 %v273
    %594 = vmatprep.subr.mxu0 0.0
    %595 = vmatpush1.msra.mxu0 %v274
    %596 = vmatprep.subr.mxu0 0.0
    %597 = vmatpush1.msra.mxu0 %v275
    %598 = vmatprep.subr.mxu0 0.0
    %599 = vmatpush1.msra.mxu0 %v276
    %600 = vmatprep.subr.mxu0 0.0
    %601 = vmatpush1.msra.mxu0 %v277
    %602 = vmatprep.subr.mxu0 0.0
    %603 = vmatpush1.msra.mxu0 %v278
    %604 = vmatprep.subr.mxu0 0.0
    %605 = vmatpush1.msra.mxu0 %v279
    %606 = vmatprep.subr.mxu0 0.0
    %607 = vmatpush1.msra.mxu0 %v280
    %608 = vmatprep.subr.mxu0 0.0
    %609 = vmatpush1.msra.mxu0 %v281
    %610 = vmatprep.subr.mxu0 0.0
    %611 = vmatpush1.msra.mxu0 %v282
    %612 = vmatprep.subr.mxu0 0.0
    %613 = vmatpush1.msra.mxu0 %v283
    %614 = vmatprep.subr.mxu0 0.0
    %615 = vmatpush1.msra.mxu0 %v284
    %616 = vmatprep.subr.mxu0 0.0
    %617 = vmatpush1.msra.mxu0 %v285
    %618 = vmatprep.subr.mxu0 0.0
    %619 = vmatpush1.msra.mxu0 %v286
    %620 = vmatprep.subr.mxu0 0.0
    %621 = vmatpush1.msra.mxu0 %v287
    %622 = vmatprep.subr.mxu0 0.0
    %623 = vmatpush1.msra.mxu0 0.0
    %624 = vmatprep.subr.mxu0 0.0
    %625 = vmatpush1.msra.mxu0 0.0
    %626 = vmatprep.subr.mxu0 0.0
    %627 = vmatpush1.msra.mxu0 0.0
    %628 = vmatprep.subr.mxu0 0.0
    %629 = vmatpush1.msra.mxu0 0.0
    %630 = vmatprep.subr.mxu0 0.0
    %631 = vmatpush1.msra.mxu0 0.0
    %632 = vmatprep.subr.mxu0 0.0
    %633 = vmatpush1.msra.mxu0 0.0
    %634 = vmatprep.subr.mxu0 0.0
    %635 = vmatpush1.msra.mxu0 0.0
    %636 = vmatprep.subr.mxu0 0.0
    %637 = vmatpush1.msra.mxu0 0.0
    %638 = vmatprep.subr.mxu0 0.0
    %639 = vmatpush1.msra.mxu0 0.0
    %640 = vmatprep.subr.mxu0 0.0
    %641 = vmatpush1.msra.mxu0 0.0
    %642 = vmatprep.subr.mxu0 0.0
    %643 = vmatpush1.msra.mxu0 0.0
    %644 = vmatprep.subr.mxu0 0.0
    %645 = vmatpush1.msra.mxu0 0.0
    %646 = vmatprep.subr.mxu0 0.0
    %647 = vmatpush1.msra.mxu0 0.0
    %648 = vmatprep.subr.mxu0 0.0
    %649 = vmatpush1.msra.mxu0 0.0
    %650 = vmatprep.subr.mxu0 0.0
    %651 = vmatpush1.msra.mxu0 0.0
    %652 = vmatprep.subr.mxu0 0.0
    %653 = vmatpush1.msra.mxu0 0.0
    %654 = vmatprep.mubr.f32.mxu0 0.0
    %655 = vmatmul.mubr.f32.gmra.mrb[0].mxu0 %v588
    %v656 = vpop.f32.mrb[0].mxu0
    %v657 = vadd.f32 1e-05, %v656
    %v658 = vpop.f32.mrb[0].mxu0
    %659 = vdwg.mxu0
    %v660 = vrsqrt.pop %v657
    %v661 = vmul.f32 %v589, %v660
    %v662 = vld [vmem:[%s3 + $0x1] sm:$0x1]
    %v663 = vmul.f32 %v574, %v661
    %v664 = vsub.f32 %v662, %v663
    %v665 = vlaneseq
    %v666 = vshrl.u32 %v665, 7
    %v667 = vsub.s32 0, %v666
    %v668 = vrot.slane %v661, %v667
    %v669 = vmul.f32 %v498, %v668
    %v670 = vlaneseq
    %v671 = vshrl.u32 %v670, 7
    %v672 = vsub.s32 0, %v671
    %v673 = vrot.slane %v664, %v672
    %v674 = vadd.f32 %v669, %v673
    %v675 = vmax.f32 %v674, 0.0
    %v676 = vld [vmem:[#allocation2] sm:$0xff]
    %v677 = vld [vmem:[#allocation2 + $0x8] sm:$0xff]
    %v678 = vld [vmem:[#allocation2 + $0x10] sm:$0xff]
    %v679 = vld [vmem:[#allocation2 + $0x18] sm:$0xff]
    %v680 = vld [vmem:[#allocation2 + $0x20] sm:$0xff]
    %v681 = vld [vmem:[#allocation2 + $0x28] sm:$0xff]
    %v682 = vld [vmem:[#allocation2 + $0x30] sm:$0xff]
    %v683 = vld [vmem:[#allocation2 + $0x38] sm:$0xff]
    %v684 = vld [vmem:[#allocation2 + $0x40] sm:$0xff]
    %v685 = vld [vmem:[#allocation2 + $0x48] sm:$0xff]
    %v686 = vld [vmem:[#allocation2 + $0x50] sm:$0xff]
    %v687 = vld [vmem:[#allocation2 + $0x58] sm:$0xff]
    %v688 = vld [vmem:[#allocation2 + $0x60] sm:$0xff]
    %v689 = vld [vmem:[#allocation2 + $0x68] sm:$0xff]
    %v690 = vld [vmem:[#allocation2 + $0x70] sm:$0xff]
    %v691 = vld [vmem:[#allocation2 + $0x78] sm:$0xff]
    %v692 = vld [vmem:[#allocation2 + $0x80] sm:$0xff]
    %v693 = vld [vmem:[#allocation2 + $0x88] sm:$0xff]
    %v694 = vld [vmem:[#allocation2 + $0x90] sm:$0xff]
    %v695 = vld [vmem:[#allocation2 + $0x98] sm:$0xff]
    %v696 = vld [vmem:[#allocation2 + $0xa0] sm:$0xff]
    %v697 = vld [vmem:[#allocation2 + $0xa8] sm:$0xff]
    %v698 = vld [vmem:[#allocation2 + $0xb0] sm:$0xff]
    %v699 = vld [vmem:[#allocation2 + $0xb8] sm:$0xff]
    %v700 = vld [vmem:[#allocation2 + $0xc0] sm:$0xff]
    %v701 = vld [vmem:[#allocation2 + $0xc8] sm:$0xff]
    %v702 = vld [vmem:[#allocation2 + $0xd0] sm:$0xff]
    %v703 = vld [vmem:[#allocation2 + $0xd8] sm:$0xff]
    %v704 = vld [vmem:[#allocation2 + $0xe0] sm:$0xff]
    %v705 = vld [vmem:[#allocation2 + $0xe8] sm:$0xff]
    %v706 = vld [vmem:[#allocation2 + $0xf0] sm:$0xff]
    %v707 = vld [vmem:[#allocation2 + $0xf8] sm:$0xff]
    %v708 = vld [vmem:[#allocation2 + $0x100] sm:$0xff]
    %v709 = vld [vmem:[#allocation2 + $0x108] sm:$0xff]
    %v710 = vld [vmem:[#allocation2 + $0x110] sm:$0xff]
    %v711 = vld [vmem:[#allocation2 + $0x118] sm:$0xff]
    %v712 = vld [vmem:[#allocation2 + $0x120] sm:$0xff]
    %v713 = vld [vmem:[#allocation2 + $0x128] sm:$0xff]
    %v714 = vld [vmem:[#allocation2 + $0x130] sm:$0xff]
    %v715 = vld [vmem:[#allocation2 + $0x138] sm:$0xff]
    %v716 = vld [vmem:[#allocation2 + $0x140] sm:$0xff]
    %v717 = vld [vmem:[#allocation2 + $0x148] sm:$0xff]
    %v718 = vld [vmem:[#allocation2 + $0x150] sm:$0xff]
    %v719 = vld [vmem:[#allocation2 + $0x158] sm:$0xff]
    %v720 = vld [vmem:[#allocation2 + $0x160] sm:$0xff]
    %v721 = vld [vmem:[#allocation2 + $0x168] sm:$0xff]
    %v722 = vld [vmem:[#allocation2 + $0x170] sm:$0xff]
    %v723 = vld [vmem:[#allocation2 + $0x178] sm:$0xff]
    %v725 = vrot.slane %v675, 7
    %v727 = vsel %vm294, 0.0, %v725
    %v728 = vrot.slane %v675, 1
    %vm730 = vcmask 1046528
    %v731 = vsel %vm730, %v728, 0.0
    %732 = vmatprep.subr.mxu0 0.0
    %733 = vmatpush1.msra.mxu0 %v676
    %734 = vmatprep.subr.mxu0 0.0
    %735 = vmatpush1.msra.mxu0 %v677
    %736 = vmatprep.subr.mxu0 0.0
    %737 = vmatpush1.msra.mxu0 %v678
    %738 = vmatprep.subr.mxu0 0.0
    %739 = vmatpush1.msra.mxu0 %v679
    %740 = vmatprep.subr.mxu0 0.0
    %741 = vmatpush1.msra.mxu0 %v680
    %742 = vmatprep.subr.mxu0 0.0
    %743 = vmatpush1.msra.mxu0 %v681
    %744 = vmatprep.subr.mxu0 0.0
    %745 = vmatpush1.msra.mxu0 %v682
    %746 = vmatprep.subr.mxu0 0.0
    %747 = vmatpush1.msra.mxu0 %v683
    %748 = vmatprep.subr.mxu0 0.0
    %749 = vmatpush1.msra.mxu0 %v684
    %750 = vmatprep.subr.mxu0 0.0
    %751 = vmatpush1.msra.mxu0 %v685
    %752 = vmatprep.subr.mxu0 0.0
    %753 = vmatpush1.msra.mxu0 %v686
    %754 = vmatprep.subr.mxu0 0.0
    %755 = vmatpush1.msra.mxu0 %v687
    %756 = vmatprep.subr.mxu0 0.0
    %757 = vmatpush1.msra.mxu0 %v688
    %758 = vmatprep.subr.mxu0 0.0
    %759 = vmatpush1.msra.mxu0 %v689
    %760 = vmatprep.subr.mxu0 0.0
    %761 = vmatpush1.msra.mxu0 %v690
    %762 = vmatprep.subr.mxu0 0.0
    %763 = vmatpush1.msra.mxu0 %v691
    %764 = vmatprep.subr.mxu0 0.0
    %765 = vmatpush1.msra.mxu0 %v692
    %766 = vmatprep.subr.mxu0 0.0
    %767 = vmatpush1.msra.mxu0 %v693
    %768 = vmatprep.subr.mxu0 0.0
    %769 = vmatpush1.msra.mxu0 %v694
    %770 = vmatprep.subr.mxu0 0.0
    %771 = vmatpush1.msra.mxu0 %v695
    %772 = vmatprep.subr.mxu0 0.0
    %773 = vmatpush1.msra.mxu0 %v696
    %774 = vmatprep.subr.mxu0 0.0
    %775 = vmatpush1.msra.mxu0 %v697
    %776 = vmatprep.subr.mxu0 0.0
    %777 = vmatpush1.msra.mxu0 %v698
    %778 = vmatprep.subr.mxu0 0.0
    %779 = vmatpush1.msra.mxu0 %v699
    %780 = vmatprep.subr.mxu0 0.0
    %781 = vmatpush1.msra.mxu0 %v700
    %782 = vmatprep.subr.mxu0 0.0
    %783 = vmatpush1.msra.mxu0 %v701
    %784 = vmatprep.subr.mxu0 0.0
    %785 = vmatpush1.msra.mxu0 %v702
    %786 = vmatprep.subr.mxu0 0.0
    %787 = vmatpush1.msra.mxu0 %v703
    %788 = vmatprep.subr.mxu0 0.0
    %789 = vmatpush1.msra.mxu0 %v704
    %790 = vmatprep.subr.mxu0 0.0
    %791 = vmatpush1.msra.mxu0 %v705
    %792 = vmatprep.subr.mxu0 0.0
    %793 = vmatpush1.msra.mxu0 %v706
    %794 = vmatprep.subr.mxu0 0.0
    %795 = vmatpush1.msra.mxu0 %v707
    %796 = vmatprep.mubr.f32.mxu0 %v675
    %797 = vmatmul.mubr.f32.gmra.mrb[0].mxu0 %v727
    %v798 = vpop.f32.mrb[0].mxu0
    %v799 = vadd.f32 0.0, %v798
    %v800 = vpop.f32.mrb[0].mxu0
    %801 = vdwg.mxu0
    %802 = vmatprep.subr.mxu0 0.0
    %803 = vmatpush1.msra.mxu0 %v708
    %804 = vmatprep.subr.mxu0 0.0
    %805 = vmatpush1.msra.mxu0 %v709
    %806 = vmatprep.subr.mxu0 0.0
    %807 = vmatpush1.msra.mxu0 %v710
    %808 = vmatprep.subr.mxu0 0.0
    %809 = vmatpush1.msra.mxu0 %v711
    %810 = vmatprep.subr.mxu0 0.0
    %811 = vmatpush1.msra.mxu0 %v712
    %812 = vmatprep.subr.mxu0 0.0
    %813 = vmatpush1.msra.mxu0 %v713
    %814 = vmatprep.subr.mxu0 0.0
    %815 = vmatpush1.msra.mxu0 %v714
    %816 = vmatprep.subr.mxu0 0.0
    %817 = vmatpush1.msra.mxu0 %v715
    %818 = vmatprep.subr.mxu0 0.0
    %819 = vmatpush1.msra.mxu0 %v716
    %820 = vmatprep.subr.mxu0 0.0
    %821 = vmatpush1.msra.mxu0 %v717
    %822 = vmatprep.subr.mxu0 0.0
    %823 = vmatpush1.msra.mxu0 %v718
    %824 = vmatprep.subr.mxu0 0.0
    %825 = vmatpush1.msra.mxu0 %v719
    %826 = vmatprep.subr.mxu0 0.0
    %827 = vmatpush1.msra.mxu0 %v720
    %828 = vmatprep.subr.mxu0 0.0
    %829 = vmatpush1.msra.mxu0 %v721
    %830 = vmatprep.subr.mxu0 0.0
    %831 = vmatpush1.msra.mxu0 %v722
    %832 = vmatprep.subr.mxu0 0.0
    %833 = vmatpush1.msra.mxu0 %v723
    %834 = vmatprep.subr.mxu0 0.0
    %835 = vmatpush1.msra.mxu0 0.0
    %836 = vmatprep.subr.mxu0 0.0
    %837 = vmatpush1.msra.mxu0 0.0
    %838 = vmatprep.subr.mxu0 0.0
    %839 = vmatpush1.msra.mxu0 0.0
    %840 = vmatprep.subr.mxu0 0.0
    %841 = vmatpush1.msra.mxu0 0.0
    %842 = vmatprep.subr.mxu0 0.0
    %843 = vmatpush1.msra.mxu0 0.0
    %844 = vmatprep.subr.mxu0 0.0
    %845 = vmatpush1.msra.mxu0 0.0
    %846 = vmatprep.subr.mxu0 0.0
    %847 = vmatpush1.msra.mxu0 0.0
    %848 = vmatprep.subr.mxu0 0.0
    %849 = vmatpush1.msra.mxu0 0.0
    %850 = vmatprep.subr.mxu0 0.0
    %851 = vmatpush1.msra.mxu0 0.0
    %852 = vmatprep.subr.mxu0 0.0
    %853 = vmatpush1.msra.mxu0 0.0
    %854 = vmatprep.subr.mxu0 0.0
    %855 = vmatpush1.msra.mxu0 0.0
    %856 = vmatprep.subr.mxu0 0.0
    %857 = vmatpush1.msra.mxu0 0.0
    %858 = vmatprep.subr.mxu0 0.0
    %859 = vmatpush1.msra.mxu0 0.0
    %860 = vmatprep.subr.mxu0 0.0
    %861 = vmatpush1.msra.mxu0 0.0
    %862 = vmatprep.subr.mxu0 0.0
    %863 = vmatpush1.msra.mxu0 0.0
    %864 = vmatprep.subr.mxu0 0.0
    %865 = vmatpush1.msra.mxu0 0.0
    %866 = vmatprep.mubr.f32.mxu0 0.0
    %867 = vmatmul.mubr.f32.gmra.mrb[0].mxu0 %v731
    %v868 = vpop.f32.mrb[0].mxu0
    %v869 = vadd.f32 %v799, %v868
    %v870 = vpop.f32.mrb[0].mxu0
    %871 = vdwg.mxu0
    %v872 = vrot.slane %v869, 4
    %v873 = vadd.f32 %v869, %v872
    %v874 = vrot.slane %v873, 2
    %v875 = vadd.f32 %v873, %v874
    %v876 = vrot.slane %v875, 1
    %v877 = vadd.f32 %v875, %v876
    %878 = vmatprep.subr.mxu0 0.0
    %879 = vmatpush1.msra.mxu0 %v272
    %880 = vmatprep.subr.mxu0 0.0
    %881 = vmatpush1.msra.mxu0 %v273
    %882 = vmatprep.subr.mxu0 0.0
    %883 = vmatpush1.msra.mxu0 %v274
    %884 = vmatprep.subr.mxu0 0.0
    %885 = vmatpush1.msra.mxu0 %v275
    %886 = vmatprep.subr.mxu0 0.0
    %887 = vmatpush1.msra.mxu0 %v276
    %888 = vmatprep.subr.mxu0 0.0
    %889 = vmatpush1.msra.mxu0 %v277
    %890 = vmatprep.subr.mxu0 0.0
    %891 = vmatpush1.msra.mxu0 %v278
    %892 = vmatprep.subr.mxu0 0.0
    %893 = vmatpush1.msra.mxu0 %v279
    %894 = vmatprep.subr.mxu0 0.0
    %895 = vmatpush1.msra.mxu0 %v280
    %896 = vmatprep.subr.mxu0 0.0
    %897 = vmatpush1.msra.mxu0 %v281
    %898 = vmatprep.subr.mxu0 0.0
    %899 = vmatpush1.msra.mxu0 %v282
    %900 = vmatprep.subr.mxu0 0.0
    %901 = vmatpush1.msra.mxu0 %v283
    %902 = vmatprep.subr.mxu0 0.0
    %903 = vmatpush1.msra.mxu0 %v284
    %904 = vmatprep.subr.mxu0 0.0
    %905 = vmatpush1.msra.mxu0 %v285
    %906 = vmatprep.subr.mxu0 0.0
    %907 = vmatpush1.msra.mxu0 %v286
    %908 = vmatprep.subr.mxu0 0.0
    %909 = vmatpush1.msra.mxu0 %v287
    %910 = vmatprep.subr.mxu0 0.0
    %911 = vmatpush1.msra.mxu0 0.0
    %912 = vmatprep.subr.mxu0 0.0
    %913 = vmatpush1.msra.mxu0 0.0
    %914 = vmatprep.subr.mxu0 0.0
    %915 = vmatpush1.msra.mxu0 0.0
    %916 = vmatprep.subr.mxu0 0.0
    %917 = vmatpush1.msra.mxu0 0.0
    %918 = vmatprep.subr.mxu0 0.0
    %919 = vmatpush1.msra.mxu0 0.0
    %920 = vmatprep.subr.mxu0 0.0
    %921 = vmatpush1.msra.mxu0 0.0
    %922 = vmatprep.subr.mxu0 0.0
    %923 = vmatpush1.msra.mxu0 0.0
    %924 = vmatprep.subr.mxu0 0.0
    %925 = vmatpush1.msra.mxu0 0.0
    %926 = vmatprep.subr.mxu0 0.0
    %927 = vmatpush1.msra.mxu0 0.0
    %928 = vmatprep.subr.mxu0 0.0
    %929 = vmatpush1.msra.mxu0 0.0
    %930 = vmatprep.subr.mxu0 0.0
    %931 = vmatpush1.msra.mxu0 0.0
    %932 = vmatprep.subr.mxu0 0.0
    %933 = vmatpush1.msra.mxu0 0.0
    %934 = vmatprep.subr.mxu0 0.0
    %935 = vmatpush1.msra.mxu0 0.0
    %936 = vmatprep.subr.mxu0 0.0
    %937 = vmatpush1.msra.mxu0 0.0
    %938 = vmatprep.subr.mxu0 0.0
    %939 = vmatpush1.msra.mxu0 0.0
    %940 = vmatprep.subr.mxu0 0.0
    %941 = vmatpush1.msra.mxu0 0.0
    %942 = vmatprep.mubr.f32.mxu0 0.0
    %943 = vmatmul.mubr.f32.gmra.mrb[0].mxu0 %v877
    %v944 = vpop.f32.mrb[0].mxu0
    %v945 = vadd.f32 0.0, %v944
    %v946 = vpop.f32.mrb[0].mxu0
    %947 = vdwg.mxu0
    %v948 = vlaneseq
    %v949 = vshrl.u32 %v948, 7
    %v950 = vsub.s32 0, %v949
    %v951 = vrot.slane %v945, %v950
    %v952 = vsub.f32 %v869, %v951
    %v953 = vmul.f32 %v952, %v952
    %v954 = vrot.slane %v953, 4
    %v955 = vadd.f32 %v953, %v954
    %v956 = vrot.slane %v955, 2
    %v957 = vadd.f32 %v955, %v956
    %v958 = vrot.slane %v957, 1
    %v959 = vadd.f32 %v957, %v958
    %s960 = scalar_lea.vmem %s3, 2
    %v961 = vld [vmem:[%s960] sm:$0x1]
    %962 = vmatprep.subr.mxu0 0.0
    %963 = vmatpush1.msra.mxu0 %v272
    %964 = vmatprep.subr.mxu0 0.0
    %965 = vmatpush1.msra.mxu0 %v273
    %966 = vmatprep.subr.mxu0 0.0
    %967 = vmatpush1.msra.mxu0 %v274
    %968 = vmatprep.subr.mxu0 0.0
    %969 = vmatpush1.msra.mxu0 %v275
    %970 = vmatprep.subr.mxu0 0.0
    %971 = vmatpush1.msra.mxu0 %v276
    %972 = vmatprep.subr.mxu0 0.0
    %973 = vmatpush1.msra.mxu0 %v277
    %974 = vmatprep.subr.mxu0 0.0
    %975 = vmatpush1.msra.mxu0 %v278
    %976 = vmatprep.subr.mxu0 0.0
    %977 = vmatpush1.msra.mxu0 %v279
    %978 = vmatprep.subr.mxu0 0.0
    %979 = vmatpush1.msra.mxu0 %v280
    %980 = vmatprep.subr.mxu0 0.0
    %981 = vmatpush1.msra.mxu0 %v281
    %982 = vmatprep.subr.mxu0 0.0
    %983 = vmatpush1.msra.mxu0 %v282
    %984 = vmatprep.subr.mxu0 0.0
    %985 = vmatpush1.msra.mxu0 %v283
    %986 = vmatprep.subr.mxu0 0.0
    %987 = vmatpush1.msra.mxu0 %v284
    %988 = vmatprep.subr.mxu0 0.0
    %989 = vmatpush1.msra.mxu0 %v285
    %990 = vmatprep.subr.mxu0 0.0
    %991 = vmatpush1.msra.mxu0 %v286
    %992 = vmatprep.subr.mxu0 0.0
    %993 = vmatpush1.msra.mxu0 %v287
    %994 = vmatprep.subr.mxu0 0.0
    %995 = vmatpush1.msra.mxu0 0.0
    %996 = vmatprep.subr.mxu0 0.0
    %997 = vmatpush1.msra.mxu0 0.0
    %998 = vmatprep.subr.mxu0 0.0
    %999 = vmatpush1.msra.mxu0 0.0
    %1000 = vmatprep.subr.mxu0 0.0
    %1001 = vmatpush1.msra.mxu0 0.0
    %1002 = vmatprep.subr.mxu0 0.0
    %1003 = vmatpush1.msra.mxu0 0.0
    %1004 = vmatprep.subr.mxu0 0.0
    %1005 = vmatpush1.msra.mxu0 0.0
    %1006 = vmatprep.subr.mxu0 0.0
    %1007 = vmatpush1.msra.mxu0 0.0
    %1008 = vmatprep.subr.mxu0 0.0
    %1009 = vmatpush1.msra.mxu0 0.0
    %1010 = vmatprep.subr.mxu0 0.0
    %1011 = vmatpush1.msra.mxu0 0.0
    %1012 = vmatprep.subr.mxu0 0.0
    %1013 = vmatpush1.msra.mxu0 0.0
    %1014 = vmatprep.subr.mxu0 0.0
    %1015 = vmatpush1.msra.mxu0 0.0
    %1016 = vmatprep.subr.mxu0 0.0
    %1017 = vmatpush1.msra.mxu0 0.0
    %1018 = vmatprep.subr.mxu0 0.0
    %1019 = vmatpush1.msra.mxu0 0.0
    %1020 = vmatprep.subr.mxu0 0.0
    %1021 = vmatpush1.msra.mxu0 0.0
    %1022 = vmatprep.subr.mxu0 0.0
    %1023 = vmatpush1.msra.mxu0 0.0
    %1024 = vmatprep.subr.mxu0 0.0
    %1025 = vmatpush1.msra.mxu0 0.0
    %1026 = vmatprep.mubr.f32.mxu0 0.0
    %1027 = vmatmul.mubr.f32.gmra.mrb[0].mxu0 %v959
    %v1028 = vpop.f32.mrb[0].mxu0
    %v1029 = vadd.f32 1e-05, %v1028
    %v1030 = vpop.f32.mrb[0].mxu0
    %1031 = vdwg.mxu0
    %v1032 = vrsqrt.pop %v1029
    %v1033 = vmul.f32 %v961, %v1032
    %v1034 = vld [vmem:[%s960 + $0x1] sm:$0x1]
    %v1035 = vmul.f32 %v945, %v1033
    %v1036 = vsub.f32 %v1034, %v1035
    %v1037 = vlaneseq
    %v1038 = vshrl.u32 %v1037, 7
    %v1039 = vsub.s32 0, %v1038
    %v1040 = vrot.slane %v1033, %v1039
    %v1041 = vmul.f32 %v869, %v1040
    %v1042 = vlaneseq
    %v1043 = vshrl.u32 %v1042, 7
    %v1044 = vsub.s32 0, %v1043
    %v1045 = vrot.slane %v1036, %v1044
    %v1046 = vadd.f32 %v1041, %v1045
    %v1047 = vmax.f32 %v1046, 0.0
    %s1048 = scalar_lea.vmem [#allocation2], 384
    %v1049 = vld [vmem:[%s1048] sm:$0xff]
    %v1050 = vld [vmem:[%s1048 + $0x8] sm:$0xff]
    %v1051 = vld [vmem:[%s1048 + $0x10] sm:$0xff]
    %v1052 = vld [vmem:[%s1048 + $0x18] sm:$0xff]
    %v1053 = vld [vmem:[%s1048 + $0x20] sm:$0xff]
    %v1054 = vld [vmem:[%s1048 + $0x28] sm:$0xff]
    %v1055 = vld [vmem:[%s1048 + $0x30] sm:$0xff]
    %v1056 = vld [vmem:[%s1048 + $0x38] sm:$0xff]
    %v1057 = vld [vmem:[%s1048 + $0x40] sm:$0xff]
    %v1058 = vld [vmem:[%s1048 + $0x48] sm:$0xff]
    %v1059 = vld [vmem:[%s1048 + $0x50] sm:$0xff]
    %v1060 = vld [vmem:[%s1048 + $0x58] sm:$0xff]
    %v1061 = vld [vmem:[%s1048 + $0x60] sm:$0xff]
    %v1062 = vld [vmem:[%s1048 + $0x68] sm:$0xff]
    %v1063 = vld [vmem:[%s1048 + $0x70] sm:$0xff]
    %v1064 = vld [vmem:[%s1048 + $0x78] sm:$0xff]
    %v1065 = vld [vmem:[%s1048 + $0x80] sm:$0xff]
    %v1066 = vld [vmem:[%s1048 + $0x88] sm:$0xff]
    %v1067 = vld [vmem:[%s1048 + $0x90] sm:$0xff]
    %v1068 = vld [vmem:[%s1048 + $0x98] sm:$0xff]
    %v1069 = vld [vmem:[%s1048 + $0xa0] sm:$0xff]
    %v1070 = vld [vmem:[%s1048 + $0xa8] sm:$0xff]
    %v1071 = vld [vmem:[%s1048 + $0xb0] sm:$0xff]
    %v1072 = vld [vmem:[%s1048 + $0xb8] sm:$0xff]
    %v1073 = vld [vmem:[%s1048 + $0xc0] sm:$0xff]
    %v1074 = vld [vmem:[%s1048 + $0xc8] sm:$0xff]
    %v1075 = vld [vmem:[%s1048 + $0xd0] sm:$0xff]
    %v1076 = vld [vmem:[%s1048 + $0xd8] sm:$0xff]
    %v1077 = vld [vmem:[%s1048 + $0xe0] sm:$0xff]
    %v1078 = vld [vmem:[%s1048 + $0xe8] sm:$0xff]
    %v1079 = vld [vmem:[%s1048 + $0xf0] sm:$0xff]
    %v1080 = vld [vmem:[%s1048 + $0xf8] sm:$0xff]
    %v1081 = vld [vmem:[%s1048 + $0x100] sm:$0xff]
    %v1082 = vld [vmem:[%s1048 + $0x108] sm:$0xff]
    %v1083 = vld [vmem:[%s1048 + $0x110] sm:$0xff]
    %v1084 = vld [vmem:[%s1048 + $0x118] sm:$0xff]
    %v1085 = vld [vmem:[%s1048 + $0x120] sm:$0xff]
    %v1086 = vld [vmem:[%s1048 + $0x128] sm:$0xff]
    %v1087 = vld [vmem:[%s1048 + $0x130] sm:$0xff]
    %v1088 = vld [vmem:[%s1048 + $0x138] sm:$0xff]
    %v1089 = vld [vmem:[%s1048 + $0x140] sm:$0xff]
    %v1090 = vld [vmem:[%s1048 + $0x148] sm:$0xff]
    %v1091 = vld [vmem:[%s1048 + $0x150] sm:$0xff]
    %v1092 = vld [vmem:[%s1048 + $0x158] sm:$0xff]
    %v1093 = vld [vmem:[%s1048 + $0x160] sm:$0xff]
    %v1094 = vld [vmem:[%s1048 + $0x168] sm:$0xff]
    %v1095 = vld [vmem:[%s1048 + $0x170] sm:$0xff]
    %v1096 = vld [vmem:[%s1048 + $0x178] sm:$0xff]
    %v1098 = vrot.slane %v1047, 7
    %v1100 = vsel %vm294, 0.0, %v1098
    %v1101 = vrot.slane %v1047, 1
    %v1103 = vsel %vm730, %v1101, 0.0
    %1104 = vmatprep.subr.mxu0 0.0
    %1105 = vmatpush1.msra.mxu0 %v1049
    %1106 = vmatprep.subr.mxu0 0.0
    %1107 = vmatpush1.msra.mxu0 %v1050
    %1108 = vmatprep.subr.mxu0 0.0
    %1109 = vmatpush1.msra.mxu0 %v1051
    %1110 = vmatprep.subr.mxu0 0.0
    %1111 = vmatpush1.msra.mxu0 %v1052
    %1112 = vmatprep.subr.mxu0 0.0
    %1113 = vmatpush1.msra.mxu0 %v1053
    %1114 = vmatprep.subr.mxu0 0.0
    %1115 = vmatpush1.msra.mxu0 %v1054
    %1116 = vmatprep.subr.mxu0 0.0
    %1117 = vmatpush1.msra.mxu0 %v1055
    %1118 = vmatprep.subr.mxu0 0.0
    %1119 = vmatpush1.msra.mxu0 %v1056
    %1120 = vmatprep.subr.mxu0 0.0
    %1121 = vmatpush1.msra.mxu0 %v1057
    %1122 = vmatprep.subr.mxu0 0.0
    %1123 = vmatpush1.msra.mxu0 %v1058
    %1124 = vmatprep.subr.mxu0 0.0
    %1125 = vmatpush1.msra.mxu0 %v1059
    %1126 = vmatprep.subr.mxu0 0.0
    %1127 = vmatpush1.msra.mxu0 %v1060
    %1128 = vmatprep.subr.mxu0 0.0
    %1129 = vmatpush1.msra.mxu0 %v1061
    %1130 = vmatprep.subr.mxu0 0.0
    %1131 = vmatpush1.msra.mxu0 %v1062
    %1132 = vmatprep.subr.mxu0 0.0
    %1133 = vmatpush1.msra.mxu0 %v1063
    %1134 = vmatprep.subr.mxu0 0.0
    %1135 = vmatpush1.msra.mxu0 %v1064
    %1136 = vmatprep.subr.mxu0 0.0
    %1137 = vmatpush1.msra.mxu0 %v1065
    %1138 = vmatprep.subr.mxu0 0.0
    %1139 = vmatpush1.msra.mxu0 %v1066
    %1140 = vmatprep.subr.mxu0 0.0
    %1141 = vmatpush1.msra.mxu0 %v1067
    %1142 = vmatprep.subr.mxu0 0.0
    %1143 = vmatpush1.msra.mxu0 %v1068
    %1144 = vmatprep.subr.mxu0 0.0
    %1145 = vmatpush1.msra.mxu0 %v1069
    %1146 = vmatprep.subr.mxu0 0.0
    %1147 = vmatpush1.msra.mxu0 %v1070
    %1148 = vmatprep.subr.mxu0 0.0
    %1149 = vmatpush1.msra.mxu0 %v1071
    %1150 = vmatprep.subr.mxu0 0.0
    %1151 = vmatpush1.msra.mxu0 %v1072
    %1152 = vmatprep.subr.mxu0 0.0
    %1153 = vmatpush1.msra.mxu0 %v1073
    %1154 = vmatprep.subr.mxu0 0.0
    %1155 = vmatpush1.msra.mxu0 %v1074
    %1156 = vmatprep.subr.mxu0 0.0
    %1157 = vmatpush1.msra.mxu0 %v1075
    %1158 = vmatprep.subr.mxu0 0.0
    %1159 = vmatpush1.msra.mxu0 %v1076
    %1160 = vmatprep.subr.mxu0 0.0
    %1161 = vmatpush1.msra.mxu0 %v1077
    %1162 = vmatprep.subr.mxu0 0.0
    %1163 = vmatpush1.msra.mxu0 %v1078
    %1164 = vmatprep.subr.mxu0 0.0
    %1165 = vmatpush1.msra.mxu0 %v1079
    %1166 = vmatprep.subr.mxu0 0.0
    %1167 = vmatpush1.msra.mxu0 %v1080
    %1168 = vmatprep.mubr.f32.mxu0 %v1047
    %1169 = vmatmul.mubr.f32.gmra.mrb[0].mxu0 %v1100
    %v1170 = vpop.f32.mrb[0].mxu0
    %v1171 = vadd.f32 0.0, %v1170
    %v1172 = vpop.f32.mrb[0].mxu0
    %1173 = vdwg.mxu0
    %1174 = vmatprep.subr.mxu0 0.0
    %1175 = vmatpush1.msra.mxu0 %v1081
    %1176 = vmatprep.subr.mxu0 0.0
    %1177 = vmatpush1.msra.mxu0 %v1082
    %1178 = vmatprep.subr.mxu0 0.0
    %1179 = vmatpush1.msra.mxu0 %v1083
    %1180 = vmatprep.subr.mxu0 0.0
    %1181 = vmatpush1.msra.mxu0 %v1084
    %1182 = vmatprep.subr.mxu0 0.0
    %1183 = vmatpush1.msra.mxu0 %v1085
    %1184 = vmatprep.subr.mxu0 0.0
    %1185 = vmatpush1.msra.mxu0 %v1086
    %1186 = vmatprep.subr.mxu0 0.0
    %1187 = vmatpush1.msra.mxu0 %v1087
    %1188 = vmatprep.subr.mxu0 0.0
    %1189 = vmatpush1.msra.mxu0 %v1088
    %1190 = vmatprep.subr.mxu0 0.0
    %1191 = vmatpush1.msra.mxu0 %v1089
    %1192 = vmatprep.subr.mxu0 0.0
    %1193 = vmatpush1.msra.mxu0 %v1090
    %1194 = vmatprep.subr.mxu0 0.0
    %1195 = vmatpush1.msra.mxu0 %v1091
    %1196 = vmatprep.subr.mxu0 0.0
    %1197 = vmatpush1.msra.mxu0 %v1092
    %1198 = vmatprep.subr.mxu0 0.0
    %1199 = vmatpush1.msra.mxu0 %v1093
    %1200 = vmatprep.subr.mxu0 0.0
    %1201 = vmatpush1.msra.mxu0 %v1094
    %1202 = vmatprep.subr.mxu0 0.0
    %1203 = vmatpush1.msra.mxu0 %v1095
    %1204 = vmatprep.subr.mxu0 0.0
    %1205 = vmatpush1.msra.mxu0 %v1096
    %1206 = vmatprep.subr.mxu0 0.0
    %1207 = vmatpush1.msra.mxu0 0.0
    %1208 = vmatprep.subr.mxu0 0.0
    %1209 = vmatpush1.msra.mxu0 0.0
    %1210 = vmatprep.subr.mxu0 0.0
    %1211 = vmatpush1.msra.mxu0 0.0
    %1212 = vmatprep.subr.mxu0 0.0
    %1213 = vmatpush1.msra.mxu0 0.0
    %1214 = vmatprep.subr.mxu0 0.0
    %1215 = vmatpush1.msra.mxu0 0.0
    %1216 = vmatprep.subr.mxu0 0.0
    %1217 = vmatpush1.msra.mxu0 0.0
    %1218 = vmatprep.subr.mxu0 0.0
    %1219 = vmatpush1.msra.mxu0 0.0
    %1220 = vmatprep.subr.mxu0 0.0
    %1221 = vmatpush1.msra.mxu0 0.0
    %1222 = vmatprep.subr.mxu0 0.0
    %1223 = vmatpush1.msra.mxu0 0.0
    %1224 = vmatprep.subr.mxu0 0.0
    %1225 = vmatpush1.msra.mxu0 0.0
    %1226 = vmatprep.subr.mxu0 0.0
    %1227 = vmatpush1.msra.mxu0 0.0
    %1228 = vmatprep.subr.mxu0 0.0
    %1229 = vmatpush1.msra.mxu0 0.0
    %1230 = vmatprep.subr.mxu0 0.0
    %1231 = vmatpush1.msra.mxu0 0.0
    %1232 = vmatprep.subr.mxu0 0.0
    %1233 = vmatpush1.msra.mxu0 0.0
    %1234 = vmatprep.subr.mxu0 0.0
    %1235 = vmatpush1.msra.mxu0 0.0
    %1236 = vmatprep.subr.mxu0 0.0
    %1237 = vmatpush1.msra.mxu0 0.0
    %1238 = vmatprep.mubr.f32.mxu0 0.0
    %1239 = vmatmul.mubr.f32.gmra.mrb[0].mxu0 %v1103
    %v1240 = vpop.f32.mrb[0].mxu0
    %v1241 = vadd.f32 %v1171, %v1240
    %v1242 = vpop.f32.mrb[0].mxu0
    %1243 = vdwg.mxu0
    %v1244 = vrot.slane %v1241, 4
    %v1245 = vadd.f32 %v1241, %v1244
    %v1246 = vrot.slane %v1245, 2
    %v1247 = vadd.f32 %v1245, %v1246
    %v1248 = vrot.slane %v1247, 1
    %v1249 = vadd.f32 %v1247, %v1248
    %1250 = vmatprep.subr.mxu0 0.0
    %1251 = vmatpush1.msra.mxu0 %v272
    %1252 = vmatprep.subr.mxu0 0.0
    %1253 = vmatpush1.msra.mxu0 %v273
    %1254 = vmatprep.subr.mxu0 0.0
    %1255 = vmatpush1.msra.mxu0 %v274
    %1256 = vmatprep.subr.mxu0 0.0
    %1257 = vmatpush1.msra.mxu0 %v275
    %1258 = vmatprep.subr.mxu0 0.0
    %1259 = vmatpush1.msra.mxu0 %v276
    %1260 = vmatprep.subr.mxu0 0.0
    %1261 = vmatpush1.msra.mxu0 %v277
    %1262 = vmatprep.subr.mxu0 0.0
    %1263 = vmatpush1.msra.mxu0 %v278
    %1264 = vmatprep.subr.mxu0 0.0
    %1265 = vmatpush1.msra.mxu0 %v279
    %1266 = vmatprep.subr.mxu0 0.0
    %1267 = vmatpush1.msra.mxu0 %v280
    %1268 = vmatprep.subr.mxu0 0.0
    %1269 = vmatpush1.msra.mxu0 %v281
    %1270 = vmatprep.subr.mxu0 0.0
    %1271 = vmatpush1.msra.mxu0 %v282
    %1272 = vmatprep.subr.mxu0 0.0
    %1273 = vmatpush1.msra.mxu0 %v283
    %1274 = vmatprep.subr.mxu0 0.0
    %1275 = vmatpush1.msra.mxu0 %v284
    %1276 = vmatprep.subr.mxu0 0.0
    %1277 = vmatpush1.msra.mxu0 %v285
    %1278 = vmatprep.subr.mxu0 0.0
    %1279 = vmatpush1.msra.mxu0 %v286
    %1280 = vmatprep.subr.mxu0 0.0
    %1281 = vmatpush1.msra.mxu0 %v287
    %1282 = vmatprep.subr.mxu0 0.0
    %1283 = vmatpush1.msra.mxu0 0.0
    %1284 = vmatprep.subr.mxu0 0.0
    %1285 = vmatpush1.msra.mxu0 0.0
    %1286 = vmatprep.subr.mxu0 0.0
    %1287 = vmatpush1.msra.mxu0 0.0
    %1288 = vmatprep.subr.mxu0 0.0
    %1289 = vmatpush1.msra.mxu0 0.0
    %1290 = vmatprep.subr.mxu0 0.0
    %1291 = vmatpush1.msra.mxu0 0.0
    %1292 = vmatprep.subr.mxu0 0.0
    %1293 = vmatpush1.msra.mxu0 0.0
    %1294 = vmatprep.subr.mxu0 0.0
    %1295 = vmatpush1.msra.mxu0 0.0
    %1296 = vmatprep.subr.mxu0 0.0
    %1297 = vmatpush1.msra.mxu0 0.0
    %1298 = vmatprep.subr.mxu0 0.0
    %1299 = vmatpush1.msra.mxu0 0.0
    %1300 = vmatprep.subr.mxu0 0.0
    %1301 = vmatpush1.msra.mxu0 0.0
    %1302 = vmatprep.subr.mxu0 0.0
    %1303 = vmatpush1.msra.mxu0 0.0
    %1304 = vmatprep.subr.mxu0 0.0
    %1305 = vmatpush1.msra.mxu0 0.0
    %1306 = vmatprep.subr.mxu0 0.0
    %1307 = vmatpush1.msra.mxu0 0.0
    %1308 = vmatprep.subr.mxu0 0.0
    %1309 = vmatpush1.msra.mxu0 0.0
    %1310 = vmatprep.subr.mxu0 0.0
    %1311 = vmatpush1.msra.mxu0 0.0
    %1312 = vmatprep.subr.mxu0 0.0
    %1313 = vmatpush1.msra.mxu0 0.0
    %1314 = vmatprep.mubr.f32.mxu0 0.0
    %1315 = vmatmul.mubr.f32.gmra.mrb[0].mxu0 %v1249
    %v1316 = vpop.f32.mrb[0].mxu0
    %v1317 = vadd.f32 0.0, %v1316
    %v1318 = vpop.f32.mrb[0].mxu0
    %1319 = vdwg.mxu0
    %v1320 = vlaneseq
    %v1321 = vshrl.u32 %v1320, 7
    %v1322 = vsub.s32 0, %v1321
    %v1323 = vrot.slane %v1317, %v1322
    %v1324 = vsub.f32 %v1241, %v1323
    %v1325 = vmul.f32 %v1324, %v1324
    %v1326 = vrot.slane %v1325, 4
    %v1327 = vadd.f32 %v1325, %v1326
    %v1328 = vrot.slane %v1327, 2
    %v1329 = vadd.f32 %v1327, %v1328
    %v1330 = vrot.slane %v1329, 1
    %v1331 = vadd.f32 %v1329, %v1330
    %s1332 = scalar_lea.vmem %s3, 4
    %v1333 = vld [vmem:[%s1332] sm:$0x1]
    %1334 = vmatprep.subr.mxu0 0.0
    %1335 = vmatpush1.msra.mxu0 %v272
    %1336 = vmatprep.subr.mxu0 0.0
    %1337 = vmatpush1.msra.mxu0 %v273
    %1338 = vmatprep.subr.mxu0 0.0
    %1339 = vmatpush1.msra.mxu0 %v274
    %1340 = vmatprep.subr.mxu0 0.0
    %1341 = vmatpush1.msra.mxu0 %v275
    %1342 = vmatprep.subr.mxu0 0.0
    %1343 = vmatpush1.msra.mxu0 %v276
    %1344 = vmatprep.subr.mxu0 0.0
    %1345 = vmatpush1.msra.mxu0 %v277
    %1346 = vmatprep.subr.mxu0 0.0
    %1347 = vmatpush1.msra.mxu0 %v278
    %1348 = vmatprep.subr.mxu0 0.0
    %1349 = vmatpush1.msra.mxu0 %v279
    %1350 = vmatprep.subr.mxu0 0.0
    %1351 = vmatpush1.msra.mxu0 %v280
    %1352 = vmatprep.subr.mxu0 0.0
    %1353 = vmatpush1.msra.mxu0 %v281
    %1354 = vmatprep.subr.mxu0 0.0
    %1355 = vmatpush1.msra.mxu0 %v282
    %1356 = vmatprep.subr.mxu0 0.0
    %1357 = vmatpush1.msra.mxu0 %v283
    %1358 = vmatprep.subr.mxu0 0.0
    %1359 = vmatpush1.msra.mxu0 %v284
    %1360 = vmatprep.subr.mxu0 0.0
    %1361 = vmatpush1.msra.mxu0 %v285
    %1362 = vmatprep.subr.mxu0 0.0
    %1363 = vmatpush1.msra.mxu0 %v286
    %1364 = vmatprep.subr.mxu0 0.0
    %1365 = vmatpush1.msra.mxu0 %v287
    %1366 = vmatprep.subr.mxu0 0.0
    %1367 = vmatpush1.msra.mxu0 0.0
    %1368 = vmatprep.subr.mxu0 0.0
    %1369 = vmatpush1.msra.mxu0 0.0
    %1370 = vmatprep.subr.mxu0 0.0
    %1371 = vmatpush1.msra.mxu0 0.0
    %1372 = vmatprep.subr.mxu0 0.0
    %1373 = vmatpush1.msra.mxu0 0.0
    %1374 = vmatprep.subr.mxu0 0.0
    %1375 = vmatpush1.msra.mxu0 0.0
    %1376 = vmatprep.subr.mxu0 0.0
    %1377 = vmatpush1.msra.mxu0 0.0
    %1378 = vmatprep.subr.mxu0 0.0
    %1379 = vmatpush1.msra.mxu0 0.0
    %1380 = vmatprep.subr.mxu0 0.0
    %1381 = vmatpush1.msra.mxu0 0.0
    %1382 = vmatprep.subr.mxu0 0.0
    %1383 = vmatpush1.msra.mxu0 0.0
    %1384 = vmatprep.subr.mxu0 0.0
    %1385 = vmatpush1.msra.mxu0 0.0
    %1386 = vmatprep.subr.mxu0 0.0
    %1387 = vmatpush1.msra.mxu0 0.0
    %1388 = vmatprep.subr.mxu0 0.0
    %1389 = vmatpush1.msra.mxu0 0.0
    %1390 = vmatprep.subr.mxu0 0.0
    %1391 = vmatpush1.msra.mxu0 0.0
    %1392 = vmatprep.subr.mxu0 0.0
    %1393 = vmatpush1.msra.mxu0 0.0
    %1394 = vmatprep.subr.mxu0 0.0
    %1395 = vmatpush1.msra.mxu0 0.0
    %1396 = vmatprep.subr.mxu0 0.0
    %1397 = vmatpush1.msra.mxu0 0.0
    %1398 = vmatprep.mubr.f32.mxu0 0.0
    %1399 = vmatmul.mubr.f32.gmra.mrb[0].mxu0 %v1331
    %v1400 = vpop.f32.mrb[0].mxu0
    %v1401 = vadd.f32 1e-05, %v1400
    %v1402 = vpop.f32.mrb[0].mxu0
    %1403 = vdwg.mxu0
    %v1404 = vrsqrt.pop %v1401
    %v1405 = vmul.f32 %v1333, %v1404
    %v1406 = vld [vmem:[%s1332 + $0x1] sm:$0x1]
    %v1407 = vmul.f32 %v1317, %v1405
    %v1408 = vsub.f32 %v1406, %v1407
    %v1409 = vlaneseq
    %v1410 = vshrl.u32 %v1409, 7
    %v1411 = vsub.s32 0, %v1410
    %v1412 = vrot.slane %v1405, %v1411
    %v1413 = vmul.f32 %v1241, %v1412
    %v1414 = vlaneseq
    %v1415 = vshrl.u32 %v1414, 7
    %v1416 = vsub.s32 0, %v1415
    %v1417 = vrot.slane %v1408, %v1416
    %v1418 = vadd.f32 %v1413, %v1417
    %v1419 = vmax.f32 %v1418, 0.0
    %1420 = vst [vmem:[%s4] sm:$0xff] %v1419
    // Predicated region
    $region22: #{compression_stage.1} parent=1 // pred_check
      _
    $region23: #{compression_stage.1} parent=1 // pred_check_branch
      %1422 = sbr.rel (0) target = $region25
    $region24: #{compression_stage.1} parent=1 // pred_region
      _
    $region25: #{compression_stage.1} parent=1 // pred_fallthru
      _
    // Predicated region
    $region26: #{compression_stage.1} parent=1 // pred_check
      _
    $region27: #{compression_stage.1} parent=1 // pred_check_branch
      %1424 = sbr.rel (0) target = $region29
    $region28: #{compression_stage.1} parent=1 // pred_region
      _
    $region29: #{compression_stage.1} parent=1 // pred_fallthru
      _
    %1425 = vsyncpa [#allocation3], 1

</llo_original>
